<compile_context>
chip_gen: v5e
topology: v5e:2x2
jax: 0.10.0
libtpu: 0.0.40
codegen_flags: <defaults>
</compile_context>

<pallas_src>
import jax
import jax.numpy as jnp
from jax.experimental import pallas as pl
from jax.experimental.pallas import tpu as pltpu

# ---------------- configuration (small synthetic shapes) ----------------
B = 2              # batch
IN_FEATURES = 4    # conv in channels
CONV_OUT = 8       # conv out channels
OUT_FEATURES = 2   # classifier outputs
HIDDEN = 32        # GRU hidden size
NUM_LAYERS = 2     # GRU layers
L = 16             # input sequence length (time)
KSIZE = 3          # Conv1d kernel size
DROPOUT = 0.1      # unused at inference (identity)
BN_EPS = 1e-5

L_OUT = L - KSIZE + 1      # 14
T_POOL = L_OUT // 2        # 7


# ---------------- fused Pallas kernel ----------------
def make_fused_kernel(num_layers, batch_pad, hidden, c_in, k_size):
    """Whole TriggerWordDetector forward in one kernel.

    Input refs (in order):
      x        : (L*Bp, Cin)   time-major flat, row = l*Bp + b (batch zero-padded to Bp)
      w_conv   : (K*Cin, Cout) BN folded in, im2col layout (row = k*Cin + i)
      b_conv   : (1, Cout)     BN folded in
      per GRU layer:
        wx_rz (In, 2H)=[Wr_x|Wz_x], wx_h (In, H)=Wh_x,
        whc   (H, 2H)=[Wr_h|Wz_h],  whh  (H, H)=Wh_h,
        b_rz  (1, 2H)=[b_r|b_z],    b_h  (1, H)
      w1 (H,128), b1 (1,128), w2 (128,Out), b2 (1,Out)
    Output ref: (Bp, Out).  No scratch (sequence lives in registers).
    """

    def kernel(*refs):
        n_in = 3 + 6 * num_layers + 4
        x_ref, wconv_ref, bconv_ref = refs[0], refs[1], refs[2]
        gru_refs = refs[3:3 + 6 * num_layers]
        w1_ref, b1_ref, w2_ref, b2_ref = refs[3 + 6 * num_layers:n_in]
        o_ref = refs[n_in]

        Bp = batch_pad
        H = hidden
        c_out = wconv_ref.shape[1]
        l_total = x_ref.shape[0] // Bp
        l_out = l_total - (k_size - 1)
        t_pool = l_out // 2

        # ---- Conv1d (BN folded) + ReLU: single im2col matmul over all (time, batch) rows ----
        xw = x_ref[...]                                             # (L*Bp, Cin), row = l*Bp + b
        patches = jnp.concatenate(
            [xw[k * Bp:(k + l_out) * Bp, :] for k in range(k_size)], axis=1)  # (l_out*Bp, K*Cin)
        y = jnp.maximum(
            jnp.dot(patches, wconv_ref[...], preferred_element_type=jnp.float32)
            + bconv_ref[...], 0.0)                                  # (l_out*Bp, Cout)

        # ---- MaxPool1d(kernel=2, stride=2) over time, single vectorized max ----
        y3 = y[:2 * t_pool * Bp, :].reshape(t_pool, 2 * Bp, c_out)
        pooled = jnp.maximum(y3[:, 0:Bp, :], y3[:, Bp:2 * Bp, :])   # (T, Bp, Cout)
        cur = pooled.reshape(t_pool * Bp, c_out)                    # (T*Bp, Cout), row = t*Bp + b
        # Dropout(p) -> identity at inference.

        # ---- Multi-layer GRU (custom GRUCell semantics) ----
        h = jnp.zeros((Bp, H), jnp.float32)
        for li in range(num_layers):
            (wx_rz_ref, wx_h_ref, whc_ref, whh_ref,
             brz_ref, bh_ref) = gru_refs[6 * li:6 * li + 6]
            # Hoisted gate-major x-projections + biases for ALL timesteps at once.
            xp_rz = (jnp.dot(cur, wx_rz_ref[...], preferred_element_type=jnp.float32)
                     + brz_ref[...])                                # (T*Bp, 2H) = [r | z]
            xp_h = (jnp.dot(cur, wx_h_ref[...], preferred_element_type=jnp.float32)
                    + bh_ref[...])                                  # (T*Bp, H)  = h~ pre-act
            whc = whc_ref[...]                                      # (H, 2H) = [Wr_h | Wz_h]
            whh = whh_ref[...]                                      # (H, H)
            h = jnp.zeros((Bp, H), jnp.float32)
            last_layer = (li == num_layers - 1)
            hs = []
            for t in range(t_pool):                                 # fully unrolled (T=7)
                rz_pre = (jnp.dot(h, whc, preferred_element_type=jnp.float32)
                          + xp_rz[t * Bp:(t + 1) * Bp, :])          # offset-0 sublane-aligned read
                rz = 0.5 * (jnp.tanh(0.5 * rz_pre) + 1.0)           # sigmoid via one EUP tanh
                r = rz[:, :H]
                z = rz[:, H:]
                h_tilde = jnp.tanh(
                    jnp.dot(r * h, whh, preferred_element_type=jnp.float32)
                    + xp_h[t * Bp:(t + 1) * Bp, :])
                h = h + z * (h_tilde - h)                           # (1-z)*h + z*h~
                if not last_layer:
                    hs.append(h)                                    # keep sequence in registers
            if not last_layer:
                cur = jnp.concatenate(hs, axis=0)                   # (T*Bp, H), no VMEM scratch

        # ---- classifier: Linear -> Dropout(identity) -> ReLU -> Linear ----
        hid = jnp.maximum(
            jnp.dot(h, w1_ref[...], preferred_element_type=jnp.float32) + b1_ref[...],
            0.0)
        o_ref[...] = (jnp.dot(hid, w2_ref[...], preferred_element_type=jnp.float32)
                      + b2_ref[...])

    return kernel


# ---------------- wrapper ----------------
@jax.jit
def trigger_word_detector(params, x_ncw):
    b, c_in, l = x_ncw.shape
    bp = ((b + 7) // 8) * 8                       # pad batch to a full sublane group
    x_pad = jnp.pad(x_ncw.astype(jnp.float32), ((0, bp - b), (0, 0), (0, 0)))
    # NCW -> time-major flat (L*Bp, Cin), row = l*Bp + b  (negligible at this size)
    x_flat = jnp.transpose(x_pad, (2, 0, 1)).reshape(l * bp, c_in)

    args = [x_flat, params["w_conv"], params["b_conv"]]
    for g in params["gru"]:
        args += [g["wx_rz"], g["wx_h"], g["whc"], g["whh"], g["b_rz"], g["b_h"]]
    args += [params["w1"], params["b1"], params["w2"], params["b2"]]

    vmem = pl.BlockSpec(memory_space=pltpu.MemorySpace.VMEM)
    out = pl.pallas_call(
        make_fused_kernel(NUM_LAYERS, bp, HIDDEN, c_in, KSIZE),
        out_shape=jax.ShapeDtypeStruct((bp, OUT_FEATURES), jnp.float32),
        in_specs=[vmem] * len(args),
        out_specs=vmem,
    )(*args)
    return out[:b]


# ---------------- parameter init (mirrors the PyTorch module init) ----------------
def _xavier_uniform(key, shape):
    fan_in, fan_out = shape
    limit = (6.0 / (fan_in + fan_out)) ** 0.5
    return jax.random.uniform(key, shape, jnp.float32, -limit, limit)


def _uniform_fan_in(key, shape, fan_in):
    bound = 1.0 / (fan_in ** 0.5)
    return jax.random.uniform(key, shape, jnp.float32, -bound, bound)


def init_params(key):
    keys = jax.random.split(key, 4 + 3 * NUM_LAYERS + 4)
    nxt = iter(keys).__next__

    # Conv1d (torch layout (Cout, Cin, K)) + BatchNorm1d eval params.
    conv_w = _uniform_fan_in(nxt(), (CONV_OUT, IN_FEATURES, KSIZE), IN_FEATURES * KSIZE)
    conv_b = _uniform_fan_in(nxt(), (CONV_OUT,), IN_FEATURES * KSIZE)
    gamma = jnp.ones((CONV_OUT,), jnp.float32)
    beta = jnp.zeros((CONV_OUT,), jnp.float32)
    run_mean = jnp.zeros((CONV_OUT,), jnp.float32)
    run_var = jnp.ones((CONV_OUT,), jnp.float32)

    # Fold BatchNorm (eval) into the conv: w' = w * s, b' = b*s + (beta - mean*s).
    s = gamma / jnp.sqrt(run_var + BN_EPS)                              # (Cout,)
    w_kio = jnp.transpose(conv_w, (2, 1, 0)) * s                        # (K, Cin, Cout)
    w_im2col = w_kio.reshape(KSIZE * IN_FEATURES, CONV_OUT)             # row = k*Cin + i
    b_fold = (conv_b * s + (beta - run_mean * s)).reshape(1, CONV_OUT)

    # GRU layers: W_* are (In + H, H); concat order is (hidden, x) -> rows [:H] hit h.
    gru_kernel, gru_raw = [], []
    for layer in range(NUM_LAYERS):
        in_f = CONV_OUT if layer == 0 else HIDDEN
        wz = _xavier_uniform(nxt(), (in_f + HIDDEN, HIDDEN))
        wr = _xavier_uniform(nxt(), (in_f + HIDDEN, HIDDEN))
        wh = _xavier_uniform(nxt(), (in_f + HIDDEN, HIDDEN))
        bz = jnp.zeros((HIDDEN,), jnp.float32)
        br = jnp.ones((HIDDEN,), jnp.float32)       # matches GRUCell init (b_r = ones)
        bh = jnp.zeros((HIDDEN,), jnp.float32)
        gru_raw.append((wz, wr, wh, bz, br, bh))
        gru_kernel.append(dict(
            wx_rz=jnp.concatenate([wr[HIDDEN:], wz[HIDDEN:]], axis=1),   # (In, 2H) = [r|z]
            wx_h=wh[HIDDEN:],                                            # (In, H)
            whc=jnp.concatenate([wr[:HIDDEN], wz[:HIDDEN]], axis=1),     # (H, 2H)
            whh=wh[:HIDDEN],                                             # (H, H)
            b_rz=jnp.concatenate([br, bz]).reshape(1, 2 * HIDDEN),       # (1, 2H)
            b_h=bh.reshape(1, HIDDEN),                                   # (1, H)
        ))

    # Classifier, stored (in, out) so the kernel does x @ W.
    w1 = _uniform_fan_in(nxt(), (HIDDEN, 128), HIDDEN)
    b1 = _uniform_fan_in(nxt(), (128,), HIDDEN)
    w2 = _uniform_fan_in(nxt(), (128, OUT_FEATURES), 128)
    b2 = _uniform_fan_in(nxt(), (OUT_FEATURES,), 128)

    params = dict(w_conv=w_im2col, b_conv=b_fold, gru=gru_kernel,
                  w1=w1, b1=b1.reshape(1, 128), w2=w2, b2=b2.reshape(1, OUT_FEATURES))
    raw = dict(conv_w=conv_w, conv_b=conv_b, gamma=gamma, beta=beta,
               mean=run_mean, var=run_var, gru=gru_raw, w1=w1, b1=b1, w2=w2, b2=b2)
    return params, raw


# ---------------- pure-JAX reference (mirrors the PyTorch module) ----------------
def reference_forward(raw, x_ncw):
    hp = jax.lax.Precision.HIGHEST
    x = x_ncw.astype(jnp.float32)                       # (B, Cin, L)
    w = raw["conv_w"]                                   # (Cout, Cin, K)
    l_out = x.shape[2] - w.shape[2] + 1
    conv = jnp.zeros((x.shape[0], w.shape[0], l_out), jnp.float32)
    for k in range(w.shape[2]):
        conv = conv + jnp.einsum("bil,oi->bol", x[:, :, k:k + l_out], w[:, :, k],
                                 precision=hp)
    conv = conv + raw["conv_b"][None, :, None]
    s = raw["gamma"] / jnp.sqrt(raw["var"] + BN_EPS)
    conv = conv * s[None, :, None] + (raw["beta"] - raw["mean"] * s)[None, :, None]
    conv = jnp.maximum(conv, 0.0)
    t_pool = l_out // 2
    conv = conv[:, :, :2 * t_pool].reshape(conv.shape[0], conv.shape[1], t_pool, 2).max(-1)
    cur = jnp.transpose(conv, (0, 2, 1))                # (B, T, C)
    for (wz, wr, wh, bz, br, bh) in raw["gru"]:
        h = jnp.zeros((cur.shape[0], HIDDEN), jnp.float32)
        outs = []
        for t in range(cur.shape[1]):
            xt = cur[:, t, :]
            cat = jnp.concatenate([h, xt], axis=1)
            r = jax.nn.sigmoid(jnp.dot(cat, wr, precision=hp) + br)
            z = jax.nn.sigmoid(jnp.dot(cat, wz, precision=hp) + bz)
            cat2 = jnp.concatenate([r * h, xt], axis=1)
            ht = jnp.tanh(jnp.dot(cat2, wh, precision=hp) + bh)
            h = (1.0 - z) * h + z * ht
            outs.append(h)
        cur = jnp.stack(outs, axis=1)                   # (B, T, H)
    last = cur[:, -1, :]
    hid = jnp.maximum(jnp.dot(last, raw["w1"], precision=hp) + raw["b1"], 0.0)
    return jnp.dot(hid, raw["w2"], precision=hp) + raw["b2"]


if __name__ == "__main__":
    key = jax.random.PRNGKey(0)
    k_params, k_x = jax.random.split(key)
    params, raw = init_params(k_params)
    x = jax.random.normal(k_x, (B, IN_FEATURES, L), jnp.float32)   # NCW, like PyTorch

    out = jax.block_until_ready(trigger_word_detector(params, x))
    assert out.shape == (B, OUT_FEATURES), out.shape
    assert bool(jnp.all(jnp.isfinite(out)))

    ref = reference_forward(raw, x)
    err = float(jnp.max(jnp.abs(out - ref)))
    assert err < 1e-2, f"max abs err {err}"
    print("KERNEL_OK")
</pallas_src>

<mosaic_0001>
module attributes {stable_mosaic.version = 11 : i64} {
  func.func @kernel(%arg0: memref<128x4xf32, #tpu.memory_space<vmem>>, %arg1: memref<12x8xf32, #tpu.memory_space<vmem>>, %arg2: memref<1x8xf32, #tpu.memory_space<vmem>>, %arg3: memref<8x64xf32, #tpu.memory_space<vmem>>, %arg4: memref<8x32xf32, #tpu.memory_space<vmem>>, %arg5: memref<32x64xf32, #tpu.memory_space<vmem>>, %arg6: memref<32x32xf32, #tpu.memory_space<vmem>>, %arg7: memref<1x64xf32, #tpu.memory_space<vmem>>, %arg8: memref<1x32xf32, #tpu.memory_space<vmem>>, %arg9: memref<32x64xf32, #tpu.memory_space<vmem>>, %arg10: memref<32x32xf32, #tpu.memory_space<vmem>>, %arg11: memref<32x64xf32, #tpu.memory_space<vmem>>, %arg12: memref<32x32xf32, #tpu.memory_space<vmem>>, %arg13: memref<1x64xf32, #tpu.memory_space<vmem>>, %arg14: memref<1x32xf32, #tpu.memory_space<vmem>>, %arg15: memref<32x128xf32, #tpu.memory_space<vmem>>, %arg16: memref<1x128xf32, #tpu.memory_space<vmem>>, %arg17: memref<128x2xf32, #tpu.memory_space<vmem>>, %arg18: memref<1x2xf32, #tpu.memory_space<vmem>>, %arg19: memref<8x2xf32, #tpu.memory_space<vmem>>) attributes {dimension_semantics = [], scalar_prefetch = 0 : i64, scratch_operands = 0 : i64, tpu.core_type = #tpu.core_type<tc>} {
    %c0 = arith.constant 0 : index
    %c0_0 = arith.constant 0 : index
    %0 = vector.load %arg0[%c0, %c0_0] : memref<128x4xf32, #tpu.memory_space<vmem>>, vector<128x4xf32>
    %1 = vector.extract_strided_slice %0 {offsets = [0, 0], sizes = [112, 4], strides = [1, 1]} : vector<128x4xf32> to vector<112x4xf32>
    %2 = vector.extract_strided_slice %0 {offsets = [8, 0], sizes = [112, 4], strides = [1, 1]} : vector<128x4xf32> to vector<112x4xf32>
    %3 = vector.extract_strided_slice %0 {offsets = [16, 0], sizes = [112, 4], strides = [1, 1]} : vector<128x4xf32> to vector<112x4xf32>
    %4 = tpu.concatenate %1, %2, %3 in 1 : vector<112x4xf32>, vector<112x4xf32>, vector<112x4xf32> -> vector<112x12xf32>
    %c0_1 = arith.constant 0 : index
    %c0_2 = arith.constant 0 : index
    %5 = vector.load %arg1[%c0_1, %c0_2] : memref<12x8xf32, #tpu.memory_space<vmem>>, vector<12x8xf32>
    %cst = arith.constant dense<0.000000e+00> : vector<112x8xf32>
    %6 = tpu.matmul %4, %5, %cst {dimension_numbers = #tpu.dot_dimension_numbers<[1], [0], [0], [1], [0, 0, 1, 1], [], []>} : vector<112x12xf32>, vector<12x8xf32>, vector<112x8xf32> -> vector<112x8xf32>
    %c0_3 = arith.constant 0 : index
    %c0_4 = arith.constant 0 : index
    %7 = vector.load %arg2[%c0_3, %c0_4] : memref<1x8xf32, #tpu.memory_space<vmem>>, vector<1x8xf32>
    %8 = vector.broadcast %7 : vector<1x8xf32> to vector<112x8xf32>
    %9 = arith.addf %6, %8 : vector<112x8xf32>
    %cst_5 = arith.constant 0.000000e+00 : f32
    %10 = vector.broadcast %cst_5 : f32 to vector<112x8xf32>
    %11 = arith.maximumf %9, %10 : vector<112x8xf32>
    %12 = vector.shape_cast %11 : vector<112x8xf32> to vector<7x16x8xf32>
    %13 = vector.extract_strided_slice %12 {offsets = [0, 0, 0], sizes = [7, 8, 8], strides = [1, 1, 1]} : vector<7x16x8xf32> to vector<7x8x8xf32>
    %14 = vector.extract_strided_slice %12 {offsets = [0, 8, 0], sizes = [7, 8, 8], strides = [1, 1, 1]} : vector<7x16x8xf32> to vector<7x8x8xf32>
    %15 = arith.maximumf %13, %14 : vector<7x8x8xf32>
    %16 = vector.shape_cast %15 : vector<7x8x8xf32> to vector<56x8xf32>
    %c0_6 = arith.constant 0 : index
    %c0_7 = arith.constant 0 : index
    %17 = vector.load %arg3[%c0_6, %c0_7] : memref<8x64xf32, #tpu.memory_space<vmem>>, vector<8x64xf32>
    %cst_8 = arith.constant dense<0.000000e+00> : vector<56x64xf32>
    %18 = tpu.matmul %16, %17, %cst_8 {dimension_numbers = #tpu.dot_dimension_numbers<[1], [0], [0], [1], [0, 0, 1, 1], [], []>} : vector<56x8xf32>, vector<8x64xf32>, vector<56x64xf32> -> vector<56x64xf32>
    %c0_9 = arith.constant 0 : index
    %c0_10 = arith.constant 0 : index
    %19 = vector.load %arg7[%c0_9, %c0_10] : memref<1x64xf32, #tpu.memory_space<vmem>>, vector<1x64xf32>
    %20 = vector.broadcast %19 : vector<1x64xf32> to vector<56x64xf32>
    %21 = arith.addf %18, %20 : vector<56x64xf32>
    %c0_11 = arith.constant 0 : index
    %c0_12 = arith.constant 0 : index
    %22 = vector.load %arg4[%c0_11, %c0_12] : memref<8x32xf32, #tpu.memory_space<vmem>>, vector<8x32xf32>
    %cst_13 = arith.constant dense<0.000000e+00> : vector<56x32xf32>
    %23 = tpu.matmul %16, %22, %cst_13 {dimension_numbers = #tpu.dot_dimension_numbers<[1], [0], [0], [1], [0, 0, 1, 1], [], []>} : vector<56x8xf32>, vector<8x32xf32>, vector<56x32xf32> -> vector<56x32xf32>
    %c0_14 = arith.constant 0 : index
    %c0_15 = arith.constant 0 : index
    %24 = vector.load %arg8[%c0_14, %c0_15] : memref<1x32xf32, #tpu.memory_space<vmem>>, vector<1x32xf32>
    %25 = vector.broadcast %24 : vector<1x32xf32> to vector<56x32xf32>
    %26 = arith.addf %23, %25 : vector<56x32xf32>
    %c0_16 = arith.constant 0 : index
    %c0_17 = arith.constant 0 : index
    %27 = vector.load %arg5[%c0_16, %c0_17] : memref<32x64xf32, #tpu.memory_space<vmem>>, vector<32x64xf32>
    %c0_18 = arith.constant 0 : index
    %c0_19 = arith.constant 0 : index
    %28 = vector.load %arg6[%c0_18, %c0_19] : memref<32x32xf32, #tpu.memory_space<vmem>>, vector<32x32xf32>
    %cst_20 = arith.constant 0.000000e+00 : f32
    %29 = vector.broadcast %cst_20 : f32 to vector<8x32xf32>
    %cst_21 = arith.constant dense<0.000000e+00> : vector<8x64xf32>
    %30 = tpu.matmul %29, %27, %cst_21 {dimension_numbers = #tpu.dot_dimension_numbers<[1], [0], [0], [1], [0, 0, 1, 1], [], []>} : vector<8x32xf32>, vector<32x64xf32>, vector<8x64xf32> -> vector<8x64xf32>
    %31 = vector.extract_strided_slice %21 {offsets = [0, 0], sizes = [8, 64], strides = [1, 1]} : vector<56x64xf32> to vector<8x64xf32>
    %32 = arith.addf %30, %31 : vector<8x64xf32>
    %cst_22 = arith.constant 5.000000e-01 : f32
    %33 = vector.broadcast %cst_22 : f32 to vector<8x64xf32>
    %34 = arith.mulf %33, %32 : vector<8x64xf32>
    %35 = math.tanh %34 : vector<8x64xf32>
    %cst_23 = arith.constant 1.000000e+00 : f32
    %36 = vector.broadcast %cst_23 : f32 to vector<8x64xf32>
    %37 = arith.addf %35, %36 : vector<8x64xf32>
    %cst_24 = arith.constant 5.000000e-01 : f32
    %38 = vector.broadcast %cst_24 : f32 to vector<8x64xf32>
    %39 = arith.mulf %38, %37 : vector<8x64xf32>
    %40 = vector.extract_strided_slice %39 {offsets = [0, 0], sizes = [8, 32], strides = [1, 1]} : vector<8x64xf32> to vector<8x32xf32>
    %41 = vector.extract_strided_slice %39 {offsets = [0, 32], sizes = [8, 32], strides = [1, 1]} : vector<8x64xf32> to vector<8x32xf32>
    %42 = arith.mulf %40, %29 : vector<8x32xf32>
    %cst_25 = arith.constant dense<0.000000e+00> : vector<8x32xf32>
    %43 = tpu.matmul %42, %28, %cst_25 {dimension_numbers = #tpu.dot_dimension_numbers<[1], [0], [0], [1], [0, 0, 1, 1], [], []>} : vector<8x32xf32>, vector<32x32xf32>, vector<8x32xf32> -> vector<8x32xf32>
    %44 = vector.extract_strided_slice %26 {offsets = [0, 0], sizes = [8, 32], strides = [1, 1]} : vector<56x32xf32> to vector<8x32xf32>
    %45 = arith.addf %43, %44 : vector<8x32xf32>
    %46 = math.tanh %45 : vector<8x32xf32>
    %47 = arith.subf %46, %29 : vector<8x32xf32>
    %48 = arith.mulf %41, %47 : vector<8x32xf32>
    %49 = arith.addf %29, %48 : vector<8x32xf32>
    %cst_26 = arith.constant dense<0.000000e+00> : vector<8x64xf32>
    %50 = tpu.matmul %49, %27, %cst_26 {dimension_numbers = #tpu.dot_dimension_numbers<[1], [0], [0], [1], [0, 0, 1, 1], [], []>} : vector<8x32xf32>, vector<32x64xf32>, vector<8x64xf32> -> vector<8x64xf32>
    %51 = vector.extract_strided_slice %21 {offsets = [8, 0], sizes = [8, 64], strides = [1, 1]} : vector<56x64xf32> to vector<8x64xf32>
    %52 = arith.addf %50, %51 : vector<8x64xf32>
    %cst_27 = arith.constant 5.000000e-01 : f32
    %53 = vector.broadcast %cst_27 : f32 to vector<8x64xf32>
    %54 = arith.mulf %53, %52 : vector<8x64xf32>
    %55 = math.tanh %54 : vector<8x64xf32>
    %cst_28 = arith.constant 1.000000e+00 : f32
    %56 = vector.broadcast %cst_28 : f32 to vector<8x64xf32>
    %57 = arith.addf %55, %56 : vector<8x64xf32>
    %cst_29 = arith.constant 5.000000e-01 : f32
    %58 = vector.broadcast %cst_29 : f32 to vector<8x64xf32>
    %59 = arith.mulf %58, %57 : vector<8x64xf32>
    %60 = vector.extract_strided_slice %59 {offsets = [0, 0], sizes = [8, 32], strides = [1, 1]} : vector<8x64xf32> to vector<8x32xf32>
    %61 = vector.extract_strided_slice %59 {offsets = [0, 32], sizes = [8, 32], strides = [1, 1]} : vector<8x64xf32> to vector<8x32xf32>
    %62 = arith.mulf %60, %49 : vector<8x32xf32>
    %cst_30 = arith.constant dense<0.000000e+00> : vector<8x32xf32>
    %63 = tpu.matmul %62, %28, %cst_30 {dimension_numbers = #tpu.dot_dimension_numbers<[1], [0], [0], [1], [0, 0, 1, 1], [], []>} : vector<8x32xf32>, vector<32x32xf32>, vector<8x32xf32> -> vector<8x32xf32>
    %64 = vector.extract_strided_slice %26 {offsets = [8, 0], sizes = [8, 32], strides = [1, 1]} : vector<56x32xf32> to vector<8x32xf32>
    %65 = arith.addf %63, %64 : vector<8x32xf32>
    %66 = math.tanh %65 : vector<8x32xf32>
    %67 = arith.subf %66, %49 : vector<8x32xf32>
    %68 = arith.mulf %61, %67 : vector<8x32xf32>
    %69 = arith.addf %49, %68 : vector<8x32xf32>
    %cst_31 = arith.constant dense<0.000000e+00> : vector<8x64xf32>
    %70 = tpu.matmul %69, %27, %cst_31 {dimension_numbers = #tpu.dot_dimension_numbers<[1], [0], [0], [1], [0, 0, 1, 1], [], []>} : vector<8x32xf32>, vector<32x64xf32>, vector<8x64xf32> -> vector<8x64xf32>
    %71 = vector.extract_strided_slice %21 {offsets = [16, 0], sizes = [8, 64], strides = [1, 1]} : vector<56x64xf32> to vector<8x64xf32>
    %72 = arith.addf %70, %71 : vector<8x64xf32>
    %cst_32 = arith.constant 5.000000e-01 : f32
    %73 = vector.broadcast %cst_32 : f32 to vector<8x64xf32>
    %74 = arith.mulf %73, %72 : vector<8x64xf32>
    %75 = math.tanh %74 : vector<8x64xf32>
    %cst_33 = arith.constant 1.000000e+00 : f32
    %76 = vector.broadcast %cst_33 : f32 to vector<8x64xf32>
    %77 = arith.addf %75, %76 : vector<8x64xf32>
    %cst_34 = arith.constant 5.000000e-01 : f32
    %78 = vector.broadcast %cst_34 : f32 to vector<8x64xf32>
    %79 = arith.mulf %78, %77 : vector<8x64xf32>
    %80 = vector.extract_strided_slice %79 {offsets = [0, 0], sizes = [8, 32], strides = [1, 1]} : vector<8x64xf32> to vector<8x32xf32>
    %81 = vector.extract_strided_slice %79 {offsets = [0, 32], sizes = [8, 32], strides = [1, 1]} : vector<8x64xf32> to vector<8x32xf32>
    %82 = arith.mulf %80, %69 : vector<8x32xf32>
    %cst_35 = arith.constant dense<0.000000e+00> : vector<8x32xf32>
    %83 = tpu.matmul %82, %28, %cst_35 {dimension_numbers = #tpu.dot_dimension_numbers<[1], [0], [0], [1], [0, 0, 1, 1], [], []>} : vector<8x32xf32>, vector<32x32xf32>, vector<8x32xf32> -> vector<8x32xf32>
    %84 = vector.extract_strided_slice %26 {offsets = [16, 0], sizes = [8, 32], strides = [1, 1]} : vector<56x32xf32> to vector<8x32xf32>
    %85 = arith.addf %83, %84 : vector<8x32xf32>
    %86 = math.tanh %85 : vector<8x32xf32>
    %87 = arith.subf %86, %69 : vector<8x32xf32>
    %88 = arith.mulf %81, %87 : vector<8x32xf32>
    %89 = arith.addf %69, %88 : vector<8x32xf32>
    %cst_36 = arith.constant dense<0.000000e+00> : vector<8x64xf32>
    %90 = tpu.matmul %89, %27, %cst_36 {dimension_numbers = #tpu.dot_dimension_numbers<[1], [0], [0], [1], [0, 0, 1, 1], [], []>} : vector<8x32xf32>, vector<32x64xf32>, vector<8x64xf32> -> vector<8x64xf32>
    %91 = vector.extract_strided_slice %21 {offsets = [24, 0], sizes = [8, 64], strides = [1, 1]} : vector<56x64xf32> to vector<8x64xf32>
    %92 = arith.addf %90, %91 : vector<8x64xf32>
    %cst_37 = arith.constant 5.000000e-01 : f32
    %93 = vector.broadcast %cst_37 : f32 to vector<8x64xf32>
    %94 = arith.mulf %93, %92 : vector<8x64xf32>
    %95 = math.tanh %94 : vector<8x64xf32>
    %cst_38 = arith.constant 1.000000e+00 : f32
    %96 = vector.broadcast %cst_38 : f32 to vector<8x64xf32>
    %97 = arith.addf %95, %96 : vector<8x64xf32>
    %cst_39 = arith.constant 5.000000e-01 : f32
    %98 = vector.broadcast %cst_39 : f32 to vector<8x64xf32>
    %99 = arith.mulf %98, %97 : vector<8x64xf32>
    %100 = vector.extract_strided_slice %99 {offsets = [0, 0], sizes = [8, 32], strides = [1, 1]} : vector<8x64xf32> to vector<8x32xf32>
    %101 = vector.extract_strided_slice %99 {offsets = [0, 32], sizes = [8, 32], strides = [1, 1]} : vector<8x64xf32> to vector<8x32xf32>
    %102 = arith.mulf %100, %89 : vector<8x32xf32>
    %cst_40 = arith.constant dense<0.000000e+00> : vector<8x32xf32>
    %103 = tpu.matmul %102, %28, %cst_40 {dimension_numbers = #tpu.dot_dimension_numbers<[1], [0], [0], [1], [0, 0, 1, 1], [], []>} : vector<8x32xf32>, vector<32x32xf32>, vector<8x32xf32> -> vector<8x32xf32>
    %104 = vector.extract_strided_slice %26 {offsets = [24, 0], sizes = [8, 32], strides = [1, 1]} : vector<56x32xf32> to vector<8x32xf32>
    %105 = arith.addf %103, %104 : vector<8x32xf32>
    %106 = math.tanh %105 : vector<8x32xf32>
    %107 = arith.subf %106, %89 : vector<8x32xf32>
    %108 = arith.mulf %101, %107 : vector<8x32xf32>
    %109 = arith.addf %89, %108 : vector<8x32xf32>
    %cst_41 = arith.constant dense<0.000000e+00> : vector<8x64xf32>
    %110 = tpu.matmul %109, %27, %cst_41 {dimension_numbers = #tpu.dot_dimension_numbers<[1], [0], [0], [1], [0, 0, 1, 1], [], []>} : vector<8x32xf32>, vector<32x64xf32>, vector<8x64xf32> -> vector<8x64xf32>
    %111 = vector.extract_strided_slice %21 {offsets = [32, 0], sizes = [8, 64], strides = [1, 1]} : vector<56x64xf32> to vector<8x64xf32>
    %112 = arith.addf %110, %111 : vector<8x64xf32>
    %cst_42 = arith.constant 5.000000e-01 : f32
    %113 = vector.broadcast %cst_42 : f32 to vector<8x64xf32>
    %114 = arith.mulf %113, %112 : vector<8x64xf32>
    %115 = math.tanh %114 : vector<8x64xf32>
    %cst_43 = arith.constant 1.000000e+00 : f32
    %116 = vector.broadcast %cst_43 : f32 to vector<8x64xf32>
    %117 = arith.addf %115, %116 : vector<8x64xf32>
    %cst_44 = arith.constant 5.000000e-01 : f32
    %118 = vector.broadcast %cst_44 : f32 to vector<8x64xf32>
    %119 = arith.mulf %118, %117 : vector<8x64xf32>
    %120 = vector.extract_strided_slice %119 {offsets = [0, 0], sizes = [8, 32], strides = [1, 1]} : vector<8x64xf32> to vector<8x32xf32>
    %121 = vector.extract_strided_slice %119 {offsets = [0, 32], sizes = [8, 32], strides = [1, 1]} : vector<8x64xf32> to vector<8x32xf32>
    %122 = arith.mulf %120, %109 : vector<8x32xf32>
    %cst_45 = arith.constant dense<0.000000e+00> : vector<8x32xf32>
    %123 = tpu.matmul %122, %28, %cst_45 {dimension_numbers = #tpu.dot_dimension_numbers<[1], [0], [0], [1], [0, 0, 1, 1], [], []>} : vector<8x32xf32>, vector<32x32xf32>, vector<8x32xf32> -> vector<8x32xf32>
    %124 = vector.extract_strided_slice %26 {offsets = [32, 0], sizes = [8, 32], strides = [1, 1]} : vector<56x32xf32> to vector<8x32xf32>
    %125 = arith.addf %123, %124 : vector<8x32xf32>
    %126 = math.tanh %125 : vector<8x32xf32>
    %127 = arith.subf %126, %109 : vector<8x32xf32>
    %128 = arith.mulf %121, %127 : vector<8x32xf32>
    %129 = arith.addf %109, %128 : vector<8x32xf32>
    %cst_46 = arith.constant dense<0.000000e+00> : vector<8x64xf32>
    %130 = tpu.matmul %129, %27, %cst_46 {dimension_numbers = #tpu.dot_dimension_numbers<[1], [0], [0], [1], [0, 0, 1, 1], [], []>} : vector<8x32xf32>, vector<32x64xf32>, vector<8x64xf32> -> vector<8x64xf32>
    %131 = vector.extract_strided_slice %21 {offsets = [40, 0], sizes = [8, 64], strides = [1, 1]} : vector<56x64xf32> to vector<8x64xf32>
    %132 = arith.addf %130, %131 : vector<8x64xf32>
    %cst_47 = arith.constant 5.000000e-01 : f32
    %133 = vector.broadcast %cst_47 : f32 to vector<8x64xf32>
    %134 = arith.mulf %133, %132 : vector<8x64xf32>
    %135 = math.tanh %134 : vector<8x64xf32>
    %cst_48 = arith.constant 1.000000e+00 : f32
    %136 = vector.broadcast %cst_48 : f32 to vector<8x64xf32>
    %137 = arith.addf %135, %136 : vector<8x64xf32>
    %cst_49 = arith.constant 5.000000e-01 : f32
    %138 = vector.broadcast %cst_49 : f32 to vector<8x64xf32>
    %139 = arith.mulf %138, %137 : vector<8x64xf32>
    %140 = vector.extract_strided_slice %139 {offsets = [0, 0], sizes = [8, 32], strides = [1, 1]} : vector<8x64xf32> to vector<8x32xf32>
    %141 = vector.extract_strided_slice %139 {offsets = [0, 32], sizes = [8, 32], strides = [1, 1]} : vector<8x64xf32> to vector<8x32xf32>
    %142 = arith.mulf %140, %129 : vector<8x32xf32>
    %cst_50 = arith.constant dense<0.000000e+00> : vector<8x32xf32>
    %143 = tpu.matmul %142, %28, %cst_50 {dimension_numbers = #tpu.dot_dimension_numbers<[1], [0], [0], [1], [0, 0, 1, 1], [], []>} : vector<8x32xf32>, vector<32x32xf32>, vector<8x32xf32> -> vector<8x32xf32>
    %144 = vector.extract_strided_slice %26 {offsets = [40, 0], sizes = [8, 32], strides = [1, 1]} : vector<56x32xf32> to vector<8x32xf32>
    %145 = arith.addf %143, %144 : vector<8x32xf32>
    %146 = math.tanh %145 : vector<8x32xf32>
    %147 = arith.subf %146, %129 : vector<8x32xf32>
    %148 = arith.mulf %141, %147 : vector<8x32xf32>
    %149 = arith.addf %129, %148 : vector<8x32xf32>
    %cst_51 = arith.constant dense<0.000000e+00> : vector<8x64xf32>
    %150 = tpu.matmul %149, %27, %cst_51 {dimension_numbers = #tpu.dot_dimension_numbers<[1], [0], [0], [1], [0, 0, 1, 1], [], []>} : vector<8x32xf32>, vector<32x64xf32>, vector<8x64xf32> -> vector<8x64xf32>
    %151 = vector.extract_strided_slice %21 {offsets = [48, 0], sizes = [8, 64], strides = [1, 1]} : vector<56x64xf32> to vector<8x64xf32>
    %152 = arith.addf %150, %151 : vector<8x64xf32>
    %cst_52 = arith.constant 5.000000e-01 : f32
    %153 = vector.broadcast %cst_52 : f32 to vector<8x64xf32>
    %154 = arith.mulf %153, %152 : vector<8x64xf32>
    %155 = math.tanh %154 : vector<8x64xf32>
    %cst_53 = arith.constant 1.000000e+00 : f32
    %156 = vector.broadcast %cst_53 : f32 to vector<8x64xf32>
    %157 = arith.addf %155, %156 : vector<8x64xf32>
    %cst_54 = arith.constant 5.000000e-01 : f32
    %158 = vector.broadcast %cst_54 : f32 to vector<8x64xf32>
    %159 = arith.mulf %158, %157 : vector<8x64xf32>
    %160 = vector.extract_strided_slice %159 {offsets = [0, 0], sizes = [8, 32], strides = [1, 1]} : vector<8x64xf32> to vector<8x32xf32>
    %161 = vector.extract_strided_slice %159 {offsets = [0, 32], sizes = [8, 32], strides = [1, 1]} : vector<8x64xf32> to vector<8x32xf32>
    %162 = arith.mulf %160, %149 : vector<8x32xf32>
    %cst_55 = arith.constant dense<0.000000e+00> : vector<8x32xf32>
    %163 = tpu.matmul %162, %28, %cst_55 {dimension_numbers = #tpu.dot_dimension_numbers<[1], [0], [0], [1], [0, 0, 1, 1], [], []>} : vector<8x32xf32>, vector<32x32xf32>, vector<8x32xf32> -> vector<8x32xf32>
    %164 = vector.extract_strided_slice %26 {offsets = [48, 0], sizes = [8, 32], strides = [1, 1]} : vector<56x32xf32> to vector<8x32xf32>
    %165 = arith.addf %163, %164 : vector<8x32xf32>
    %166 = math.tanh %165 : vector<8x32xf32>
    %167 = arith.subf %166, %149 : vector<8x32xf32>
    %168 = arith.mulf %161, %167 : vector<8x32xf32>
    %169 = arith.addf %149, %168 : vector<8x32xf32>
    %170 = tpu.concatenate %49, %69, %89, %109, %129, %149, %169 in 0 : vector<8x32xf32>, vector<8x32xf32>, vector<8x32xf32>, vector<8x32xf32>, vector<8x32xf32>, vector<8x32xf32>, vector<8x32xf32> -> vector<56x32xf32>
    %c0_56 = arith.constant 0 : index
    %c0_57 = arith.constant 0 : index
    %171 = vector.load %arg9[%c0_56, %c0_57] : memref<32x64xf32, #tpu.memory_space<vmem>>, vector<32x64xf32>
    %cst_58 = arith.constant dense<0.000000e+00> : vector<56x64xf32>
    %172 = tpu.matmul %170, %171, %cst_58 {dimension_numbers = #tpu.dot_dimension_numbers<[1], [0], [0], [1], [0, 0, 1, 1], [], []>} : vector<56x32xf32>, vector<32x64xf32>, vector<56x64xf32> -> vector<56x64xf32>
    %c0_59 = arith.constant 0 : index
    %c0_60 = arith.constant 0 : index
    %173 = vector.load %arg13[%c0_59, %c0_60] : memref<1x64xf32, #tpu.memory_space<vmem>>, vector<1x64xf32>
    %174 = vector.broadcast %173 : vector<1x64xf32> to vector<56x64xf32>
    %175 = arith.addf %172, %174 : vector<56x64xf32>
    %c0_61 = arith.constant 0 : index
    %c0_62 = arith.constant 0 : index
    %176 = vector.load %arg10[%c0_61, %c0_62] : memref<32x32xf32, #tpu.memory_space<vmem>>, vector<32x32xf32>
    %cst_63 = arith.constant dense<0.000000e+00> : vector<56x32xf32>
    %177 = tpu.matmul %170, %176, %cst_63 {dimension_numbers = #tpu.dot_dimension_numbers<[1], [0], [0], [1], [0, 0, 1, 1], [], []>} : vector<56x32xf32>, vector<32x32xf32>, vector<56x32xf32> -> vector<56x32xf32>
    %c0_64 = arith.constant 0 : index
    %c0_65 = arith.constant 0 : index
    %178 = vector.load %arg14[%c0_64, %c0_65] : memref<1x32xf32, #tpu.memory_space<vmem>>, vector<1x32xf32>
    %179 = vector.broadcast %178 : vector<1x32xf32> to vector<56x32xf32>
    %180 = arith.addf %177, %179 : vector<56x32xf32>
    %c0_66 = arith.constant 0 : index
    %c0_67 = arith.constant 0 : index
    %181 = vector.load %arg11[%c0_66, %c0_67] : memref<32x64xf32, #tpu.memory_space<vmem>>, vector<32x64xf32>
    %c0_68 = arith.constant 0 : index
    %c0_69 = arith.constant 0 : index
    %182 = vector.load %arg12[%c0_68, %c0_69] : memref<32x32xf32, #tpu.memory_space<vmem>>, vector<32x32xf32>
    %cst_70 = arith.constant 0.000000e+00 : f32
    %183 = vector.broadcast %cst_70 : f32 to vector<8x32xf32>
    %cst_71 = arith.constant dense<0.000000e+00> : vector<8x64xf32>
    %184 = tpu.matmul %183, %181, %cst_71 {dimension_numbers = #tpu.dot_dimension_numbers<[1], [0], [0], [1], [0, 0, 1, 1], [], []>} : vector<8x32xf32>, vector<32x64xf32>, vector<8x64xf32> -> vector<8x64xf32>
    %185 = vector.extract_strided_slice %175 {offsets = [0, 0], sizes = [8, 64], strides = [1, 1]} : vector<56x64xf32> to vector<8x64xf32>
    %186 = arith.addf %184, %185 : vector<8x64xf32>
    %cst_72 = arith.constant 5.000000e-01 : f32
    %187 = vector.broadcast %cst_72 : f32 to vector<8x64xf32>
    %188 = arith.mulf %187, %186 : vector<8x64xf32>
    %189 = math.tanh %188 : vector<8x64xf32>
    %cst_73 = arith.constant 1.000000e+00 : f32
    %190 = vector.broadcast %cst_73 : f32 to vector<8x64xf32>
    %191 = arith.addf %189, %190 : vector<8x64xf32>
    %cst_74 = arith.constant 5.000000e-01 : f32
    %192 = vector.broadcast %cst_74 : f32 to vector<8x64xf32>
    %193 = arith.mulf %192, %191 : vector<8x64xf32>
    %194 = vector.extract_strided_slice %193 {offsets = [0, 0], sizes = [8, 32], strides = [1, 1]} : vector<8x64xf32> to vector<8x32xf32>
    %195 = vector.extract_strided_slice %193 {offsets = [0, 32], sizes = [8, 32], strides = [1, 1]} : vector<8x64xf32> to vector<8x32xf32>
    %196 = arith.mulf %194, %183 : vector<8x32xf32>
    %cst_75 = arith.constant dense<0.000000e+00> : vector<8x32xf32>
    %197 = tpu.matmul %196, %182, %cst_75 {dimension_numbers = #tpu.dot_dimension_numbers<[1], [0], [0], [1], [0, 0, 1, 1], [], []>} : vector<8x32xf32>, vector<32x32xf32>, vector<8x32xf32> -> vector<8x32xf32>
    %198 = vector.extract_strided_slice %180 {offsets = [0, 0], sizes = [8, 32], strides = [1, 1]} : vector<56x32xf32> to vector<8x32xf32>
    %199 = arith.addf %197, %198 : vector<8x32xf32>
    %200 = math.tanh %199 : vector<8x32xf32>
    %201 = arith.subf %200, %183 : vector<8x32xf32>
    %202 = arith.mulf %195, %201 : vector<8x32xf32>
    %203 = arith.addf %183, %202 : vector<8x32xf32>
    %cst_76 = arith.constant dense<0.000000e+00> : vector<8x64xf32>
    %204 = tpu.matmul %203, %181, %cst_76 {dimension_numbers = #tpu.dot_dimension_numbers<[1], [0], [0], [1], [0, 0, 1, 1], [], []>} : vector<8x32xf32>, vector<32x64xf32>, vector<8x64xf32> -> vector<8x64xf32>
    %205 = vector.extract_strided_slice %175 {offsets = [8, 0], sizes = [8, 64], strides = [1, 1]} : vector<56x64xf32> to vector<8x64xf32>
    %206 = arith.addf %204, %205 : vector<8x64xf32>
    %cst_77 = arith.constant 5.000000e-01 : f32
    %207 = vector.broadcast %cst_77 : f32 to vector<8x64xf32>
    %208 = arith.mulf %207, %206 : vector<8x64xf32>
    %209 = math.tanh %208 : vector<8x64xf32>
    %cst_78 = arith.constant 1.000000e+00 : f32
    %210 = vector.broadcast %cst_78 : f32 to vector<8x64xf32>
    %211 = arith.addf %209, %210 : vector<8x64xf32>
    %cst_79 = arith.constant 5.000000e-01 : f32
    %212 = vector.broadcast %cst_79 : f32 to vector<8x64xf32>
    %213 = arith.mulf %212, %211 : vector<8x64xf32>
    %214 = vector.extract_strided_slice %213 {offsets = [0, 0], sizes = [8, 32], strides = [1, 1]} : vector<8x64xf32> to vector<8x32xf32>
    %215 = vector.extract_strided_slice %213 {offsets = [0, 32], sizes = [8, 32], strides = [1, 1]} : vector<8x64xf32> to vector<8x32xf32>
    %216 = arith.mulf %214, %203 : vector<8x32xf32>
    %cst_80 = arith.constant dense<0.000000e+00> : vector<8x32xf32>
    %217 = tpu.matmul %216, %182, %cst_80 {dimension_numbers = #tpu.dot_dimension_numbers<[1], [0], [0], [1], [0, 0, 1, 1], [], []>} : vector<8x32xf32>, vector<32x32xf32>, vector<8x32xf32> -> vector<8x32xf32>
    %218 = vector.extract_strided_slice %180 {offsets = [8, 0], sizes = [8, 32], strides = [1, 1]} : vector<56x32xf32> to vector<8x32xf32>
    %219 = arith.addf %217, %218 : vector<8x32xf32>
    %220 = math.tanh %219 : vector<8x32xf32>
    %221 = arith.subf %220, %203 : vector<8x32xf32>
    %222 = arith.mulf %215, %221 : vector<8x32xf32>
    %223 = arith.addf %203, %222 : vector<8x32xf32>
    %cst_81 = arith.constant dense<0.000000e+00> : vector<8x64xf32>
    %224 = tpu.matmul %223, %181, %cst_81 {dimension_numbers = #tpu.dot_dimension_numbers<[1], [0], [0], [1], [0, 0, 1, 1], [], []>} : vector<8x32xf32>, vector<32x64xf32>, vector<8x64xf32> -> vector<8x64xf32>
    %225 = vector.extract_strided_slice %175 {offsets = [16, 0], sizes = [8, 64], strides = [1, 1]} : vector<56x64xf32> to vector<8x64xf32>
    %226 = arith.addf %224, %225 : vector<8x64xf32>
    %cst_82 = arith.constant 5.000000e-01 : f32
    %227 = vector.broadcast %cst_82 : f32 to vector<8x64xf32>
    %228 = arith.mulf %227, %226 : vector<8x64xf32>
    %229 = math.tanh %228 : vector<8x64xf32>
    %cst_83 = arith.constant 1.000000e+00 : f32
    %230 = vector.broadcast %cst_83 : f32 to vector<8x64xf32>
    %231 = arith.addf %229, %230 : vector<8x64xf32>
    %cst_84 = arith.constant 5.000000e-01 : f32
    %232 = vector.broadcast %cst_84 : f32 to vector<8x64xf32>
    %233 = arith.mulf %232, %231 : vector<8x64xf32>
    %234 = vector.extract_strided_slice %233 {offsets = [0, 0], sizes = [8, 32], strides = [1, 1]} : vector<8x64xf32> to vector<8x32xf32>
    %235 = vector.extract_strided_slice %233 {offsets = [0, 32], sizes = [8, 32], strides = [1, 1]} : vector<8x64xf32> to vector<8x32xf32>
    %236 = arith.mulf %234, %223 : vector<8x32xf32>
    %cst_85 = arith.constant dense<0.000000e+00> : vector<8x32xf32>
    %237 = tpu.matmul %236, %182, %cst_85 {dimension_numbers = #tpu.dot_dimension_numbers<[1], [0], [0], [1], [0, 0, 1, 1], [], []>} : vector<8x32xf32>, vector<32x32xf32>, vector<8x32xf32> -> vector<8x32xf32>
    %238 = vector.extract_strided_slice %180 {offsets = [16, 0], sizes = [8, 32], strides = [1, 1]} : vector<56x32xf32> to vector<8x32xf32>
    %239 = arith.addf %237, %238 : vector<8x32xf32>
    %240 = math.tanh %239 : vector<8x32xf32>
    %241 = arith.subf %240, %223 : vector<8x32xf32>
    %242 = arith.mulf %235, %241 : vector<8x32xf32>
    %243 = arith.addf %223, %242 : vector<8x32xf32>
    %cst_86 = arith.constant dense<0.000000e+00> : vector<8x64xf32>
    %244 = tpu.matmul %243, %181, %cst_86 {dimension_numbers = #tpu.dot_dimension_numbers<[1], [0], [0], [1], [0, 0, 1, 1], [], []>} : vector<8x32xf32>, vector<32x64xf32>, vector<8x64xf32> -> vector<8x64xf32>
    %245 = vector.extract_strided_slice %175 {offsets = [24, 0], sizes = [8, 64], strides = [1, 1]} : vector<56x64xf32> to vector<8x64xf32>
    %246 = arith.addf %244, %245 : vector<8x64xf32>
    %cst_87 = arith.constant 5.000000e-01 : f32
    %247 = vector.broadcast %cst_87 : f32 to vector<8x64xf32>
    %248 = arith.mulf %247, %246 : vector<8x64xf32>
    %249 = math.tanh %248 : vector<8x64xf32>
    %cst_88 = arith.constant 1.000000e+00 : f32
    %250 = vector.broadcast %cst_88 : f32 to vector<8x64xf32>
    %251 = arith.addf %249, %250 : vector<8x64xf32>
    %cst_89 = arith.constant 5.000000e-01 : f32
    %252 = vector.broadcast %cst_89 : f32 to vector<8x64xf32>
    %253 = arith.mulf %252, %251 : vector<8x64xf32>
    %254 = vector.extract_strided_slice %253 {offsets = [0, 0], sizes = [8, 32], strides = [1, 1]} : vector<8x64xf32> to vector<8x32xf32>
    %255 = vector.extract_strided_slice %253 {offsets = [0, 32], sizes = [8, 32], strides = [1, 1]} : vector<8x64xf32> to vector<8x32xf32>
    %256 = arith.mulf %254, %243 : vector<8x32xf32>
    %cst_90 = arith.constant dense<0.000000e+00> : vector<8x32xf32>
    %257 = tpu.matmul %256, %182, %cst_90 {dimension_numbers = #tpu.dot_dimension_numbers<[1], [0], [0], [1], [0, 0, 1, 1], [], []>} : vector<8x32xf32>, vector<32x32xf32>, vector<8x32xf32> -> vector<8x32xf32>
    %258 = vector.extract_strided_slice %180 {offsets = [24, 0], sizes = [8, 32], strides = [1, 1]} : vector<56x32xf32> to vector<8x32xf32>
    %259 = arith.addf %257, %258 : vector<8x32xf32>
    %260 = math.tanh %259 : vector<8x32xf32>
    %261 = arith.subf %260, %243 : vector<8x32xf32>
    %262 = arith.mulf %255, %261 : vector<8x32xf32>
    %263 = arith.addf %243, %262 : vector<8x32xf32>
    %cst_91 = arith.constant dense<0.000000e+00> : vector<8x64xf32>
    %264 = tpu.matmul %263, %181, %cst_91 {dimension_numbers = #tpu.dot_dimension_numbers<[1], [0], [0], [1], [0, 0, 1, 1], [], []>} : vector<8x32xf32>, vector<32x64xf32>, vector<8x64xf32> -> vector<8x64xf32>
    %265 = vector.extract_strided_slice %175 {offsets = [32, 0], sizes = [8, 64], strides = [1, 1]} : vector<56x64xf32> to vector<8x64xf32>
    %266 = arith.addf %264, %265 : vector<8x64xf32>
    %cst_92 = arith.constant 5.000000e-01 : f32
    %267 = vector.broadcast %cst_92 : f32 to vector<8x64xf32>
    %268 = arith.mulf %267, %266 : vector<8x64xf32>
    %269 = math.tanh %268 : vector<8x64xf32>
    %cst_93 = arith.constant 1.000000e+00 : f32
    %270 = vector.broadcast %cst_93 : f32 to vector<8x64xf32>
    %271 = arith.addf %269, %270 : vector<8x64xf32>
    %cst_94 = arith.constant 5.000000e-01 : f32
    %272 = vector.broadcast %cst_94 : f32 to vector<8x64xf32>
    %273 = arith.mulf %272, %271 : vector<8x64xf32>
    %274 = vector.extract_strided_slice %273 {offsets = [0, 0], sizes = [8, 32], strides = [1, 1]} : vector<8x64xf32> to vector<8x32xf32>
    %275 = vector.extract_strided_slice %273 {offsets = [0, 32], sizes = [8, 32], strides = [1, 1]} : vector<8x64xf32> to vector<8x32xf32>
    %276 = arith.mulf %274, %263 : vector<8x32xf32>
    %cst_95 = arith.constant dense<0.000000e+00> : vector<8x32xf32>
    %277 = tpu.matmul %276, %182, %cst_95 {dimension_numbers = #tpu.dot_dimension_numbers<[1], [0], [0], [1], [0, 0, 1, 1], [], []>} : vector<8x32xf32>, vector<32x32xf32>, vector<8x32xf32> -> vector<8x32xf32>
    %278 = vector.extract_strided_slice %180 {offsets = [32, 0], sizes = [8, 32], strides = [1, 1]} : vector<56x32xf32> to vector<8x32xf32>
    %279 = arith.addf %277, %278 : vector<8x32xf32>
    %280 = math.tanh %279 : vector<8x32xf32>
    %281 = arith.subf %280, %263 : vector<8x32xf32>
    %282 = arith.mulf %275, %281 : vector<8x32xf32>
    %283 = arith.addf %263, %282 : vector<8x32xf32>
    %cst_96 = arith.constant dense<0.000000e+00> : vector<8x64xf32>
    %284 = tpu.matmul %283, %181, %cst_96 {dimension_numbers = #tpu.dot_dimension_numbers<[1], [0], [0], [1], [0, 0, 1, 1], [], []>} : vector<8x32xf32>, vector<32x64xf32>, vector<8x64xf32> -> vector<8x64xf32>
    %285 = vector.extract_strided_slice %175 {offsets = [40, 0], sizes = [8, 64], strides = [1, 1]} : vector<56x64xf32> to vector<8x64xf32>
    %286 = arith.addf %284, %285 : vector<8x64xf32>
    %cst_97 = arith.constant 5.000000e-01 : f32
    %287 = vector.broadcast %cst_97 : f32 to vector<8x64xf32>
    %288 = arith.mulf %287, %286 : vector<8x64xf32>
    %289 = math.tanh %288 : vector<8x64xf32>
    %cst_98 = arith.constant 1.000000e+00 : f32
    %290 = vector.broadcast %cst_98 : f32 to vector<8x64xf32>
    %291 = arith.addf %289, %290 : vector<8x64xf32>
    %cst_99 = arith.constant 5.000000e-01 : f32
    %292 = vector.broadcast %cst_99 : f32 to vector<8x64xf32>
    %293 = arith.mulf %292, %291 : vector<8x64xf32>
    %294 = vector.extract_strided_slice %293 {offsets = [0, 0], sizes = [8, 32], strides = [1, 1]} : vector<8x64xf32> to vector<8x32xf32>
    %295 = vector.extract_strided_slice %293 {offsets = [0, 32], sizes = [8, 32], strides = [1, 1]} : vector<8x64xf32> to vector<8x32xf32>
    %296 = arith.mulf %294, %283 : vector<8x32xf32>
    %cst_100 = arith.constant dense<0.000000e+00> : vector<8x32xf32>
    %297 = tpu.matmul %296, %182, %cst_100 {dimension_numbers = #tpu.dot_dimension_numbers<[1], [0], [0], [1], [0, 0, 1, 1], [], []>} : vector<8x32xf32>, vector<32x32xf32>, vector<8x32xf32> -> vector<8x32xf32>
    %298 = vector.extract_strided_slice %180 {offsets = [40, 0], sizes = [8, 32], strides = [1, 1]} : vector<56x32xf32> to vector<8x32xf32>
    %299 = arith.addf %297, %298 : vector<8x32xf32>
    %300 = math.tanh %299 : vector<8x32xf32>
    %301 = arith.subf %300, %283 : vector<8x32xf32>
    %302 = arith.mulf %295, %301 : vector<8x32xf32>
    %303 = arith.addf %283, %302 : vector<8x32xf32>
    %cst_101 = arith.constant dense<0.000000e+00> : vector<8x64xf32>
    %304 = tpu.matmul %303, %181, %cst_101 {dimension_numbers = #tpu.dot_dimension_numbers<[1], [0], [0], [1], [0, 0, 1, 1], [], []>} : vector<8x32xf32>, vector<32x64xf32>, vector<8x64xf32> -> vector<8x64xf32>
    %305 = vector.extract_strided_slice %175 {offsets = [48, 0], sizes = [8, 64], strides = [1, 1]} : vector<56x64xf32> to vector<8x64xf32>
    %306 = arith.addf %304, %305 : vector<8x64xf32>
    %cst_102 = arith.constant 5.000000e-01 : f32
    %307 = vector.broadcast %cst_102 : f32 to vector<8x64xf32>
    %308 = arith.mulf %307, %306 : vector<8x64xf32>
    %309 = math.tanh %308 : vector<8x64xf32>
    %cst_103 = arith.constant 1.000000e+00 : f32
    %310 = vector.broadcast %cst_103 : f32 to vector<8x64xf32>
    %311 = arith.addf %309, %310 : vector<8x64xf32>
    %cst_104 = arith.constant 5.000000e-01 : f32
    %312 = vector.broadcast %cst_104 : f32 to vector<8x64xf32>
    %313 = arith.mulf %312, %311 : vector<8x64xf32>
    %314 = vector.extract_strided_slice %313 {offsets = [0, 0], sizes = [8, 32], strides = [1, 1]} : vector<8x64xf32> to vector<8x32xf32>
    %315 = vector.extract_strided_slice %313 {offsets = [0, 32], sizes = [8, 32], strides = [1, 1]} : vector<8x64xf32> to vector<8x32xf32>
    %316 = arith.mulf %314, %303 : vector<8x32xf32>
    %cst_105 = arith.constant dense<0.000000e+00> : vector<8x32xf32>
    %317 = tpu.matmul %316, %182, %cst_105 {dimension_numbers = #tpu.dot_dimension_numbers<[1], [0], [0], [1], [0, 0, 1, 1], [], []>} : vector<8x32xf32>, vector<32x32xf32>, vector<8x32xf32> -> vector<8x32xf32>
    %318 = vector.extract_strided_slice %180 {offsets = [48, 0], sizes = [8, 32], strides = [1, 1]} : vector<56x32xf32> to vector<8x32xf32>
    %319 = arith.addf %317, %318 : vector<8x32xf32>
    %320 = math.tanh %319 : vector<8x32xf32>
    %321 = arith.subf %320, %303 : vector<8x32xf32>
    %322 = arith.mulf %315, %321 : vector<8x32xf32>
    %323 = arith.addf %303, %322 : vector<8x32xf32>
    %c0_106 = arith.constant 0 : index
    %c0_107 = arith.constant 0 : index
    %324 = vector.load %arg15[%c0_106, %c0_107] : memref<32x128xf32, #tpu.memory_space<vmem>>, vector<32x128xf32>
    %cst_108 = arith.constant dense<0.000000e+00> : vector<8x128xf32>
    %325 = tpu.matmul %323, %324, %cst_108 {dimension_numbers = #tpu.dot_dimension_numbers<[1], [0], [0], [1], [0, 0, 1, 1], [], []>} : vector<8x32xf32>, vector<32x128xf32>, vector<8x128xf32> -> vector<8x128xf32>
    %c0_109 = arith.constant 0 : index
    %c0_110 = arith.constant 0 : index
    %326 = vector.load %arg16[%c0_109, %c0_110] : memref<1x128xf32, #tpu.memory_space<vmem>>, vector<1x128xf32>
    %327 = vector.broadcast %326 : vector<1x128xf32> to vector<8x128xf32>
    %328 = arith.addf %325, %327 : vector<8x128xf32>
    %cst_111 = arith.constant 0.000000e+00 : f32
    %329 = vector.broadcast %cst_111 : f32 to vector<8x128xf32>
    %330 = arith.maximumf %328, %329 : vector<8x128xf32>
    %c0_112 = arith.constant 0 : index
    %c0_113 = arith.constant 0 : index
    %331 = vector.load %arg17[%c0_112, %c0_113] : memref<128x2xf32, #tpu.memory_space<vmem>>, vector<128x2xf32>
    %cst_114 = arith.constant dense<0.000000e+00> : vector<8x2xf32>
    %332 = tpu.matmul %330, %331, %cst_114 {dimension_numbers = #tpu.dot_dimension_numbers<[1], [0], [0], [1], [0, 0, 1, 1], [], []>} : vector<8x128xf32>, vector<128x2xf32>, vector<8x2xf32> -> vector<8x2xf32>
    %c0_115 = arith.constant 0 : index
    %c0_116 = arith.constant 0 : index
    %333 = vector.load %arg18[%c0_115, %c0_116] : memref<1x2xf32, #tpu.memory_space<vmem>>, vector<1x2xf32>
    %334 = vector.broadcast %333 : vector<1x2xf32> to vector<8x2xf32>
    %335 = arith.addf %332, %334 : vector<8x2xf32>
    %c0_117 = arith.constant 0 : index
    %c0_118 = arith.constant 0 : index
    %336 = vector.load %arg19[%c0_117, %c0_118] : memref<8x2xf32, #tpu.memory_space<vmem>>, vector<8x2xf32>
    tpu.vector_store %arg19[%c0_117, %c0_118], %335 {strides = array<i32>} : memref<8x2xf32, #tpu.memory_space<vmem>>, vector<8x2xf32>,
    return
  }
}

</mosaic_0001>

<llo_original>
// kernel: trigger_word_detector.1
$region0: #{trigger_word_detector.1}
  #allocation0 [shape = 'u32[]', space=smem, size = 0x4, offset = 0x4, fixed_abs, tag = 'smem constant byte address 0x4 - core index']
  #allocation1 [shape = 'u32[72,128]{1,0:T(1,128)}', space=vmem, size = 0x9000, scoped, tag = 'internal scratch']
  %s0 = inlined_call_operand.vmem [shape: f32[128,4], index: 0, kind: input, shape index: {}]
  %s1 = inlined_call_operand.vmem [shape: f32[12,8], index: 1, kind: input, shape index: {}]
  %s2 = inlined_call_operand.vmem [shape: f32[1,8], index: 2, kind: input, shape index: {}]
  %s3 = inlined_call_operand.vmem [shape: f32[8,64], index: 3, kind: input, shape index: {}]
  %s4 = inlined_call_operand.vmem [shape: f32[8,32], index: 4, kind: input, shape index: {}]
  %s5 = inlined_call_operand.vmem [shape: f32[32,64], index: 5, kind: input, shape index: {}]
  %s6 = inlined_call_operand.vmem [shape: f32[32,32], index: 6, kind: input, shape index: {}]
  %s7 = inlined_call_operand.vmem [shape: f32[1,64], index: 7, kind: input, shape index: {}]
  %s8 = inlined_call_operand.vmem [shape: f32[1,32], index: 8, kind: input, shape index: {}]
  %s9 = inlined_call_operand.vmem [shape: f32[32,64], index: 9, kind: input, shape index: {}]
  %s10 = inlined_call_operand.vmem [shape: f32[32,32], index: 10, kind: input, shape index: {}]
  %s11 = inlined_call_operand.vmem [shape: f32[32,64], index: 11, kind: input, shape index: {}]
  %s12 = inlined_call_operand.vmem [shape: f32[32,32], index: 12, kind: input, shape index: {}]
  %s13 = inlined_call_operand.vmem [shape: f32[1,64], index: 13, kind: input, shape index: {}]
  %s14 = inlined_call_operand.vmem [shape: f32[1,32], index: 14, kind: input, shape index: {}]
  %s15 = inlined_call_operand.vmem [shape: f32[32,128], index: 15, kind: input, shape index: {}]
  %s16 = inlined_call_operand.vmem [shape: f32[1,128], index: 16, kind: input, shape index: {}]
  %s17 = inlined_call_operand.vmem [shape: f32[128,2], index: 17, kind: input, shape index: {}]
  %s18 = inlined_call_operand.vmem [shape: f32[1,2], index: 18, kind: input, shape index: {}]
  %s19 = inlined_call_operand.vmem [shape: f32[8,2], index: 19, kind: output, shape index: {}]
  %s20 = sld [smem:[#allocation0]]
  $region86: #{trigger_word_detector.1} parent=0
    _
  %s22 = ssub.s32 1, %s20
  %s23 = scalar_select 0, %s22, %s20
  // Predicated region
  $region2: #{trigger_word_detector.1} parent=0 // pred_check
    _
  $region3: #{trigger_word_detector.1} parent=0 // pred_check_branch
    %25 = sbr.rel (0) target = $region5
  $region4: #{trigger_word_detector.1} parent=0 // pred_region
    _
  $region5: #{trigger_word_detector.1} parent=0 // pred_fallthru
    _
  // Predicated region
  $region6: #{trigger_word_detector.1} parent=0 // pred_check
    _
  $region7: #{trigger_word_detector.1} parent=0 // pred_check_branch
    %27 = sbr.rel (0) target = $region9
  $region8: #{trigger_word_detector.1} parent=0 // pred_region
    _
  $region9: #{trigger_word_detector.1} parent=0 // pred_fallthru
    _
  // Predicated region
  $region10: #{trigger_word_detector.1} parent=0 // pred_check
    _
  $region11: #{trigger_word_detector.1} parent=0 // pred_check_branch
    %29 = sbr.rel (0) target = $region13
  $region12: #{trigger_word_detector.1} parent=0 // pred_region
    _
  $region13: #{trigger_word_detector.1} parent=0 // pred_fallthru
    _
  // Predicated region
  $region14: #{trigger_word_detector.1} parent=0 // pred_check
    _
  $region15: #{trigger_word_detector.1} parent=0 // pred_check_branch
    %31 = sbr.rel (0) target = $region17
  $region16: #{trigger_word_detector.1} parent=0 // pred_region
    _
  $region17: #{trigger_word_detector.1} parent=0 // pred_fallthru
    _
  // Predicated region
  $region18: #{trigger_word_detector.1} parent=0 // pred_check
    _
  $region19: #{trigger_word_detector.1} parent=0 // pred_check_branch
    %33 = sbr.rel (0) target = $region21
  $region20: #{trigger_word_detector.1} parent=0 // pred_region
    _
  $region21: #{trigger_word_detector.1} parent=0 // pred_fallthru
    _
  // Predicated region
  $region22: #{trigger_word_detector.1} parent=0 // pred_check
    _
  $region23: #{trigger_word_detector.1} parent=0 // pred_check_branch
    %35 = sbr.rel (0) target = $region25
  $region24: #{trigger_word_detector.1} parent=0 // pred_region
    _
  $region25: #{trigger_word_detector.1} parent=0 // pred_fallthru
    _
  // Predicated region
  $region26: #{trigger_word_detector.1} parent=0 // pred_check
    _
  $region27: #{trigger_word_detector.1} parent=0 // pred_check_branch
    %37 = sbr.rel (0) target = $region29
  $region28: #{trigger_word_detector.1} parent=0 // pred_region
    _
  $region29: #{trigger_word_detector.1} parent=0 // pred_fallthru
    _
  // Predicated region
  $region30: #{trigger_word_detector.1} parent=0 // pred_check
    _
  $region31: #{trigger_word_detector.1} parent=0 // pred_check_branch
    %39 = sbr.rel (0) target = $region33
  $region32: #{trigger_word_detector.1} parent=0 // pred_region
    _
  $region33: #{trigger_word_detector.1} parent=0 // pred_fallthru
    _
  // Predicated region
  $region34: #{trigger_word_detector.1} parent=0 // pred_check
    _
  $region35: #{trigger_word_detector.1} parent=0 // pred_check_branch
    %41 = sbr.rel (0) target = $region37
  $region36: #{trigger_word_detector.1} parent=0 // pred_region
    _
  $region37: #{trigger_word_detector.1} parent=0 // pred_fallthru
    _
  // Predicated region
  $region38: #{trigger_word_detector.1} parent=0 // pred_check
    _
  $region39: #{trigger_word_detector.1} parent=0 // pred_check_branch
    %43 = sbr.rel (0) target = $region41
  $region40: #{trigger_word_detector.1} parent=0 // pred_region
    _
  $region41: #{trigger_word_detector.1} parent=0 // pred_fallthru
    _
  // Predicated region
  $region42: #{trigger_word_detector.1} parent=0 // pred_check
    _
  $region43: #{trigger_word_detector.1} parent=0 // pred_check_branch
    %45 = sbr.rel (0) target = $region45
  $region44: #{trigger_word_detector.1} parent=0 // pred_region
    _
  $region45: #{trigger_word_detector.1} parent=0 // pred_fallthru
    _
  // Predicated region
  $region46: #{trigger_word_detector.1} parent=0 // pred_check
    _
  $region47: #{trigger_word_detector.1} parent=0 // pred_check_branch
    %47 = sbr.rel (0) target = $region49
  $region48: #{trigger_word_detector.1} parent=0 // pred_region
    _
  $region49: #{trigger_word_detector.1} parent=0 // pred_fallthru
    _
  // Predicated region
  $region50: #{trigger_word_detector.1} parent=0 // pred_check
    _
  $region51: #{trigger_word_detector.1} parent=0 // pred_check_branch
    %49 = sbr.rel (0) target = $region53
  $region52: #{trigger_word_detector.1} parent=0 // pred_region
    _
  $region53: #{trigger_word_detector.1} parent=0 // pred_fallthru
    _
  // Predicated region
  $region54: #{trigger_word_detector.1} parent=0 // pred_check
    _
  $region55: #{trigger_word_detector.1} parent=0 // pred_check_branch
    %51 = sbr.rel (0) target = $region57
  $region56: #{trigger_word_detector.1} parent=0 // pred_region
    _
  $region57: #{trigger_word_detector.1} parent=0 // pred_fallthru
    _
  // Predicated region
  $region58: #{trigger_word_detector.1} parent=0 // pred_check
    _
  $region59: #{trigger_word_detector.1} parent=0 // pred_check_branch
    %53 = sbr.rel (0) target = $region61
  $region60: #{trigger_word_detector.1} parent=0 // pred_region
    _
  $region61: #{trigger_word_detector.1} parent=0 // pred_fallthru
    _
  // Predicated region
  $region62: #{trigger_word_detector.1} parent=0 // pred_check
    _
  $region63: #{trigger_word_detector.1} parent=0 // pred_check_branch
    %55 = sbr.rel (0) target = $region65
  $region64: #{trigger_word_detector.1} parent=0 // pred_region
    _
  $region65: #{trigger_word_detector.1} parent=0 // pred_fallthru
    _
  // Predicated region
  $region66: #{trigger_word_detector.1} parent=0 // pred_check
    _
  $region67: #{trigger_word_detector.1} parent=0 // pred_check_branch
    %57 = sbr.rel (0) target = $region69
  $region68: #{trigger_word_detector.1} parent=0 // pred_region
    _
  $region69: #{trigger_word_detector.1} parent=0 // pred_fallthru
    _
  // Predicated region
  $region70: #{trigger_word_detector.1} parent=0 // pred_check
    _
  $region71: #{trigger_word_detector.1} parent=0 // pred_check_branch
    %59 = sbr.rel (0) target = $region73
  $region72: #{trigger_word_detector.1} parent=0 // pred_region
    _
  $region73: #{trigger_word_detector.1} parent=0 // pred_fallthru
    _
  // Predicated region
  $region74: #{trigger_word_detector.1} parent=0 // pred_check
    _
  $region75: #{trigger_word_detector.1} parent=0 // pred_check_branch
    %61 = sbr.rel (0) target = $region77
  $region76: #{trigger_word_detector.1} parent=0 // pred_region
    _
  $region77: #{trigger_word_detector.1} parent=0 // pred_fallthru
    _
  %v62 = vld [vmem:[%s0] sm:$0xff]
  %v63 = vld [vmem:[%s0 + $0x8] sm:$0xff]
  %v64 = vld [vmem:[%s0 + $0x10] sm:$0xff]
  %v65 = vld [vmem:[%s0 + $0x18] sm:$0xff]
  %v66 = vld [vmem:[%s0 + $0x20] sm:$0xff]
  %v67 = vld [vmem:[%s0 + $0x28] sm:$0xff]
  %v68 = vld [vmem:[%s0 + $0x30] sm:$0xff]
  %v69 = vld [vmem:[%s0 + $0x38] sm:$0xff]
  %v70 = vld [vmem:[%s0 + $0x40] sm:$0xff]
  %v71 = vld [vmem:[%s0 + $0x48] sm:$0xff]
  %v72 = vld [vmem:[%s0 + $0x50] sm:$0xff]
  %v73 = vld [vmem:[%s0 + $0x58] sm:$0xff]
  %v74 = vld [vmem:[%s0 + $0x60] sm:$0xff]
  %v75 = vld [vmem:[%s0 + $0x68] sm:$0xff]
  %v76 = vld [vmem:[%s0 + $0x70] sm:$0xff]
  %v77 = vld [vmem:[%s0 + $0x78] sm:$0xff]
  %92 = vrot.lane.b32.xlu0 %v63, 4
  %v93 = vpop.permute.xlu0 %92
  %94 = vrot.lane.b32.xlu0 %v64, 4
  %v95 = vpop.permute.xlu0 %94
  %96 = vrot.lane.b32.xlu0 %v65, 4
  %v97 = vpop.permute.xlu0 %96
  %98 = vrot.lane.b32.xlu0 %v66, 4
  %v99 = vpop.permute.xlu0 %98
  %100 = vrot.lane.b32.xlu0 %v67, 4
  %v101 = vpop.permute.xlu0 %100
  %102 = vrot.lane.b32.xlu0 %v68, 4
  %v103 = vpop.permute.xlu0 %102
  %104 = vrot.lane.b32.xlu0 %v69, 4
  %v105 = vpop.permute.xlu0 %104
  %106 = vrot.lane.b32.xlu0 %v70, 4
  %v107 = vpop.permute.xlu0 %106
  %108 = vrot.lane.b32.xlu0 %v71, 4
  %v109 = vpop.permute.xlu0 %108
  %110 = vrot.lane.b32.xlu0 %v72, 4
  %v111 = vpop.permute.xlu0 %110
  %112 = vrot.lane.b32.xlu0 %v73, 4
  %v113 = vpop.permute.xlu0 %112
  %114 = vrot.lane.b32.xlu0 %v74, 4
  %v115 = vpop.permute.xlu0 %114
  %116 = vrot.lane.b32.xlu0 %v75, 4
  %v117 = vpop.permute.xlu0 %116
  %118 = vrot.lane.b32.xlu0 %v76, 4
  %v119 = vpop.permute.xlu0 %118
  %135 = vrot.lane.b32.xlu0 %v64, 8
  %v136 = vpop.permute.xlu0 %135
  %137 = vrot.lane.b32.xlu0 %v65, 8
  %v138 = vpop.permute.xlu0 %137
  %139 = vrot.lane.b32.xlu0 %v66, 8
  %v140 = vpop.permute.xlu0 %139
  %141 = vrot.lane.b32.xlu0 %v67, 8
  %v142 = vpop.permute.xlu0 %141
  %143 = vrot.lane.b32.xlu0 %v68, 8
  %v144 = vpop.permute.xlu0 %143
  %145 = vrot.lane.b32.xlu0 %v69, 8
  %v146 = vpop.permute.xlu0 %145
  %147 = vrot.lane.b32.xlu0 %v70, 8
  %v148 = vpop.permute.xlu0 %147
  %149 = vrot.lane.b32.xlu0 %v71, 8
  %v150 = vpop.permute.xlu0 %149
  %151 = vrot.lane.b32.xlu0 %v72, 8
  %v152 = vpop.permute.xlu0 %151
  %153 = vrot.lane.b32.xlu0 %v73, 8
  %v154 = vpop.permute.xlu0 %153
  %155 = vrot.lane.b32.xlu0 %v74, 8
  %v156 = vpop.permute.xlu0 %155
  %157 = vrot.lane.b32.xlu0 %v75, 8
  %v158 = vpop.permute.xlu0 %157
  %159 = vrot.lane.b32.xlu0 %v76, 8
  %v160 = vpop.permute.xlu0 %159
  %161 = vrot.lane.b32.xlu0 %v77, 8
  %v162 = vpop.permute.xlu0 %161
  %vm177 = vcmask 31744
  %v178 = vsel %vm177, %v62, %v93
  %v179 = vsel %vm177, %v63, %v95
  %v180 = vsel %vm177, %v64, %v97
  %v181 = vsel %vm177, %v65, %v99
  %v182 = vsel %vm177, %v66, %v101
  %v183 = vsel %vm177, %v67, %v103
  %v184 = vsel %vm177, %v68, %v105
  %v185 = vsel %vm177, %v69, %v107
  %v186 = vsel %vm177, %v70, %v109
  %v187 = vsel %vm177, %v71, %v111
  %v188 = vsel %vm177, %v72, %v113
  %v189 = vsel %vm177, %v73, %v115
  %v190 = vsel %vm177, %v74, %v117
  %v191 = vsel %vm177, %v75, %v119
  %vm192 = vcmask 64512
  %v193 = vsel %vm192, %v178, %v136
  %v194 = vsel %vm192, %v179, %v138
  %v195 = vsel %vm192, %v180, %v140
  %v196 = vsel %vm192, %v181, %v142
  %v197 = vsel %vm192, %v182, %v144
  %v198 = vsel %vm192, %v183, %v146
  %v199 = vsel %vm192, %v184, %v148
  %v200 = vsel %vm192, %v185, %v150
  %v201 = vsel %vm192, %v186, %v152
  %v202 = vsel %vm192, %v187, %v154
  %v203 = vsel %vm192, %v188, %v156
  %v204 = vsel %vm192, %v189, %v158
  %v205 = vsel %vm192, %v190, %v160
  %v206 = vsel %vm192, %v191, %v162
  %v207 = vld [vmem:[%s1] sm:$0xff]
  %v208 = vld [vmem:[%s1 + $0x8] sm:$0xf]
  %v209 = vld [vmem:[%s2] sm:$0x1]
  %v211 = vperm.slane %v209, 0
  %vm213 = vcmask 97280
  %v215 = vsel %vm213, %v193, 0
  %v218 = vsel %vm213, %v194, 0
  %v221 = vsel %vm213, %v195, 0
  %v224 = vsel %vm213, %v196, 0
  %v227 = vsel %vm213, %v197, 0
  %v230 = vsel %vm213, %v198, 0
  %v233 = vsel %vm213, %v199, 0
  %v236 = vsel %vm213, %v200, 0
  %v239 = vsel %vm213, %v201, 0
  %v242 = vsel %vm213, %v202, 0
  %v245 = vsel %vm213, %v203, 0
  %v248 = vsel %vm213, %v204, 0
  %v251 = vsel %vm213, %v205, 0
  %v254 = vsel %vm213, %v206, 0
  %vm256 = vcmask 1043456
  %v258 = vsel %vm256, %v208, 0
  %260 = vmatpush.msra.mxu0 0.0
  %261 = vmatpush.msra.mxu0 0.0
  %262 = vmatpush.msra.mxu0 0.0
  %263 = vmatpush.msra.mxu0 0.0
  %264 = vmatpush.msra.mxu0 0.0
  %265 = vmatpush.msra.mxu0 0.0
  %266 = vmatpush.msra.mxu0 0.0
  %267 = vmatpush.msra.mxu0 0.0
  %268 = vmatpush.msra.mxu0 0.0
  %269 = vmatpush.msra.mxu0 0.0
  %270 = vmatpush.msra.mxu0 0.0
  %271 = vmatpush.msra.mxu0 0.0
  %272 = vmatpush.msra.mxu0 0.0
  %273 = vmatpush.msra.mxu0 0.0
  %274 = vmatpush.msra.mxu0 %v258
  %275 = vmatpush.msra.mxu0 %v207
  %276 = vmatmul.f32.gmra.mxu0 %v215
  %v277 = vpop.f32.mrf.mxu0
  %v278 = vadd.f32 %v211, %v277
  %279 = vmatmul.f32.gmra.mxu0 %v218
  %v280 = vpop.f32.mrf.mxu0
  %v281 = vadd.f32 %v211, %v280
  %282 = vmatmul.f32.gmra.mxu0 %v221
  %v283 = vpop.f32.mrf.mxu0
  %v284 = vadd.f32 %v211, %v283
  %285 = vmatmul.f32.gmra.mxu0 %v224
  %v286 = vpop.f32.mrf.mxu0
  %v287 = vadd.f32 %v211, %v286
  %288 = vmatmul.f32.gmra.mxu0 %v227
  %v289 = vpop.f32.mrf.mxu0
  %v290 = vadd.f32 %v211, %v289
  %291 = vmatmul.f32.gmra.mxu0 %v230
  %v292 = vpop.f32.mrf.mxu0
  %v293 = vadd.f32 %v211, %v292
  %294 = vmatmul.f32.gmra.mxu0 %v233
  %v295 = vpop.f32.mrf.mxu0
  %v296 = vadd.f32 %v211, %v295
  %297 = vmatmul.f32.gmra.mxu0 %v236
  %v298 = vpop.f32.mrf.mxu0
  %v299 = vadd.f32 %v211, %v298
  %300 = vmatmul.f32.gmra.mxu0 %v239
  %v301 = vpop.f32.mrf.mxu0
  %v302 = vadd.f32 %v211, %v301
  %303 = vmatmul.f32.gmra.mxu0 %v242
  %v304 = vpop.f32.mrf.mxu0
  %v305 = vadd.f32 %v211, %v304
  %306 = vmatmul.f32.gmra.mxu0 %v245
  %v307 = vpop.f32.mrf.mxu0
  %v308 = vadd.f32 %v211, %v307
  %309 = vmatmul.f32.gmra.mxu0 %v248
  %v310 = vpop.f32.mrf.mxu0
  %v311 = vadd.f32 %v211, %v310
  %312 = vmatmul.f32.gmra.mxu0 %v251
  %v313 = vpop.f32.mrf.mxu0
  %v314 = vadd.f32 %v211, %v313
  %315 = vmatmul.f32.gmra.mxu0 %v254
  %v316 = vpop.f32.mrf.mxu0
  %v317 = vadd.f32 %v211, %v316
  %318 = vdwg.mxu0
  %v319 = vmax.f32 %v278, 0.0
  %v320 = vmax.f32 %v281, 0.0
  %v321 = vmax.f32 %v284, 0.0
  %v322 = vmax.f32 %v287, 0.0
  %v323 = vmax.f32 %v290, 0.0
  %v324 = vmax.f32 %v293, 0.0
  %v325 = vmax.f32 %v296, 0.0
  %v326 = vmax.f32 %v299, 0.0
  %v327 = vmax.f32 %v302, 0.0
  %v328 = vmax.f32 %v305, 0.0
  %v329 = vmax.f32 %v308, 0.0
  %v330 = vmax.f32 %v311, 0.0
  %v331 = vmax.f32 %v314, 0.0
  %v332 = vmax.f32 %v317, 0.0
  %v333 = vmax.f32 %v319, %v320
  %v334 = vmax.f32 %v321, %v322
  %v335 = vmax.f32 %v323, %v324
  %v336 = vmax.f32 %v325, %v326
  %v337 = vmax.f32 %v327, %v328
  %v338 = vmax.f32 %v329, %v330
  %v339 = vmax.f32 %v331, %v332
  %v340 = vld [vmem:[%s3] sm:$0xff]
  %v341 = vld [vmem:[%s7] sm:$0x1]
  %v343 = vperm.slane %v341, 0
  %v346 = vsel %vm192, %v333, 0
  %v349 = vsel %vm192, %v334, 0
  %v352 = vsel %vm192, %v335, 0
  %v355 = vsel %vm192, %v336, 0
  %v358 = vsel %vm192, %v337, 0
  %v361 = vsel %vm192, %v338, 0
  %v364 = vsel %vm192, %v339, 0
  %366 = vmatpush.msra.mxu0 0.0
  %367 = vmatpush.msra.mxu0 0.0
  %368 = vmatpush.msra.mxu0 0.0
  %369 = vmatpush.msra.mxu0 0.0
  %370 = vmatpush.msra.mxu0 0.0
  %371 = vmatpush.msra.mxu0 0.0
  %372 = vmatpush.msra.mxu0 0.0
  %373 = vmatpush.msra.mxu0 0.0
  %374 = vmatpush.msra.mxu0 0.0
  %375 = vmatpush.msra.mxu0 0.0
  %376 = vmatpush.msra.mxu0 0.0
  %377 = vmatpush.msra.mxu0 0.0
  %378 = vmatpush.msra.mxu0 0.0
  %379 = vmatpush.msra.mxu0 0.0
  %380 = vmatpush.msra.mxu0 0.0
  %381 = vmatpush.msra.mxu0 %v340
  %382 = vmatmul.f32.gmra.mxu0 %v346
  %v383 = vpop.f32.mrf.mxu0
  %v384 = vadd.f32 %v343, %v383
  %385 = vmatmul.f32.gmra.mxu0 %v349
  %v386 = vpop.f32.mrf.mxu0
  %v387 = vadd.f32 %v343, %v386
  %388 = vmatmul.f32.gmra.mxu0 %v352
  %v389 = vpop.f32.mrf.mxu0
  %v390 = vadd.f32 %v343, %v389
  %391 = vmatmul.f32.gmra.mxu0 %v355
  %v392 = vpop.f32.mrf.mxu0
  %v393 = vadd.f32 %v343, %v392
  %394 = vmatmul.f32.gmra.mxu0 %v358
  %v395 = vpop.f32.mrf.mxu0
  %v396 = vadd.f32 %v343, %v395
  %397 = vmatmul.f32.gmra.mxu0 %v361
  %v398 = vpop.f32.mrf.mxu0
  %v399 = vadd.f32 %v343, %v398
  %400 = vmatmul.f32.gmra.mxu0 %v364
  %v401 = vpop.f32.mrf.mxu0
  %v402 = vadd.f32 %v343, %v401
  %403 = vdwg.mxu0
  %v404 = vld [vmem:[%s4] sm:$0xff]
  %v405 = vld [vmem:[%s8] sm:$0x1]
  %v407 = vperm.slane %v405, 0
  %409 = vmatpush.msra.mxu0 0.0
  %410 = vmatpush.msra.mxu0 0.0
  %411 = vmatpush.msra.mxu0 0.0
  %412 = vmatpush.msra.mxu0 0.0
  %413 = vmatpush.msra.mxu0 0.0
  %414 = vmatpush.msra.mxu0 0.0
  %415 = vmatpush.msra.mxu0 0.0
  %416 = vmatpush.msra.mxu0 0.0
  %417 = vmatpush.msra.mxu0 0.0
  %418 = vmatpush.msra.mxu0 0.0
  %419 = vmatpush.msra.mxu0 0.0
  %420 = vmatpush.msra.mxu0 0.0
  %421 = vmatpush.msra.mxu0 0.0
  %422 = vmatpush.msra.mxu0 0.0
  %423 = vmatpush.msra.mxu0 0.0
  %424 = vmatpush.msra.mxu0 %v404
  %425 = vmatmul.f32.gmra.mxu0 %v346
  %v426 = vpop.f32.mrf.mxu0
  %v427 = vadd.f32 %v407, %v426
  %428 = vmatmul.f32.gmra.mxu0 %v349
  %v429 = vpop.f32.mrf.mxu0
  %v430 = vadd.f32 %v407, %v429
  %431 = vmatmul.f32.gmra.mxu0 %v352
  %v432 = vpop.f32.mrf.mxu0
  %v433 = vadd.f32 %v407, %v432
  %434 = vmatmul.f32.gmra.mxu0 %v355
  %v435 = vpop.f32.mrf.mxu0
  %v436 = vadd.f32 %v407, %v435
  %437 = vmatmul.f32.gmra.mxu0 %v358
  %v438 = vpop.f32.mrf.mxu0
  %v439 = vadd.f32 %v407, %v438
  %440 = vmatmul.f32.gmra.mxu0 %v361
  %v441 = vpop.f32.mrf.mxu0
  %v442 = vadd.f32 %v407, %v441
  %443 = vmatmul.f32.gmra.mxu0 %v364
  %v444 = vpop.f32.mrf.mxu0
  %v445 = vadd.f32 %v407, %v444
  %446 = vdwg.mxu0
  %v447 = vld [vmem:[%s5] sm:$0xff]
  %v448 = vld [vmem:[%s5 + $0x8] sm:$0xff]
  %v449 = vld [vmem:[%s5 + $0x10] sm:$0xff]
  %v450 = vld [vmem:[%s5 + $0x18] sm:$0xff]
  %v451 = vld [vmem:[%s6] sm:$0xff]
  %v452 = vld [vmem:[%s6 + $0x8] sm:$0xff]
  %v453 = vld [vmem:[%s6 + $0x10] sm:$0xff]
  %v454 = vld [vmem:[%s6 + $0x18] sm:$0xff]
  %vm455 = vcmask 261120
  %v457 = vsel %vm455, 0.0, 0
  %459 = vmatpush.msra.mxu0 0.0
  %460 = vmatpush.msra.mxu0 0.0
  %461 = vmatpush.msra.mxu0 0.0
  %462 = vmatpush.msra.mxu0 0.0
  %463 = vmatpush.msra.mxu0 0.0
  %464 = vmatpush.msra.mxu0 0.0
  %465 = vmatpush.msra.mxu0 0.0
  %466 = vmatpush.msra.mxu0 0.0
  %467 = vmatpush.msra.mxu0 0.0
  %468 = vmatpush.msra.mxu0 0.0
  %469 = vmatpush.msra.mxu0 0.0
  %470 = vmatpush.msra.mxu0 0.0
  %471 = vmatpush.msra.mxu0 %v450
  %472 = vmatpush.msra.mxu0 %v449
  %473 = vmatpush.msra.mxu0 %v448
  %474 = vmatpush.msra.mxu0 %v447
  %475 = vmatmul.f32.gmra.mxu0 %v457
  %v476 = vpop.f32.mrf.mxu0
  %v477 = vadd.f32 %v384, %v476
  %478 = vdwg.mxu0
  %v479 = vmul.f32 %v477, 0.5
  %v480 = vtanh.pop %v479
  %v481 = vadd.f32 %v480, 1.0
  %v482 = vmul.f32 %v481, 0.5
  %v483 = vmul.f32 %v482, 0.0
  %v485 = vsel %vm455, %v483, 0
  %487 = vmatpush.msra.mxu0 0.0
  %488 = vmatpush.msra.mxu0 0.0
  %489 = vmatpush.msra.mxu0 0.0
  %490 = vmatpush.msra.mxu0 0.0
  %491 = vmatpush.msra.mxu0 0.0
  %492 = vmatpush.msra.mxu0 0.0
  %493 = vmatpush.msra.mxu0 0.0
  %494 = vmatpush.msra.mxu0 0.0
  %495 = vmatpush.msra.mxu0 0.0
  %496 = vmatpush.msra.mxu0 0.0
  %497 = vmatpush.msra.mxu0 0.0
  %498 = vmatpush.msra.mxu0 0.0
  %499 = vmatpush.msra.mxu0 %v454
  %500 = vmatpush.msra.mxu0 %v453
  %501 = vmatpush.msra.mxu0 %v452
  %502 = vmatpush.msra.mxu0 %v451
  %503 = vmatmul.f32.gmra.mxu0 %v485
  %v504 = vpop.f32.mrf.mxu0
  %v505 = vadd.f32 %v427, %v504
  %506 = vdwg.mxu0
  %v507 = vtanh.pop %v505
  %509 = vrot.lane.b32.xlu0 %v507, 32
  %v510 = vpop.permute.xlu0 %509
  %v512 = vmul.f32 %v482, %v510
  %v513 = vadd.f32 %v512, 0.0
  %515 = vrot.lane.b32.xlu0 %v513, 96
  %v516 = vpop.permute.xlu0 %515
  %v517 = vsel %vm455, %v516, 0
  %519 = vmatpush.msra.mxu0 0.0
  %520 = vmatpush.msra.mxu0 0.0
  %521 = vmatpush.msra.mxu0 0.0
  %522 = vmatpush.msra.mxu0 0.0
  %523 = vmatpush.msra.mxu0 0.0
  %524 = vmatpush.msra.mxu0 0.0
  %525 = vmatpush.msra.mxu0 0.0
  %526 = vmatpush.msra.mxu0 0.0
  %527 = vmatpush.msra.mxu0 0.0
  %528 = vmatpush.msra.mxu0 0.0
  %529 = vmatpush.msra.mxu0 0.0
  %530 = vmatpush.msra.mxu0 0.0
  %531 = vmatpush.msra.mxu0 %v450
  %532 = vmatpush.msra.mxu0 %v449
  %533 = vmatpush.msra.mxu0 %v448
  %534 = vmatpush.msra.mxu0 %v447
  %535 = vmatmul.f32.gmra.mxu0 %v517
  %v536 = vpop.f32.mrf.mxu0
  %v537 = vadd.f32 %v387, %v536
  %538 = vdwg.mxu0
  %v539 = vmul.f32 %v537, 0.5
  %v540 = vtanh.pop %v539
  %v541 = vadd.f32 %v540, 1.0
  %v542 = vmul.f32 %v541, 0.5
  %v544 = vmul.f32 %v542, %v516
  %v546 = vsel %vm455, %v544, 0
  %548 = vmatpush.msra.mxu0 0.0
  %549 = vmatpush.msra.mxu0 0.0
  %550 = vmatpush.msra.mxu0 0.0
  %551 = vmatpush.msra.mxu0 0.0
  %552 = vmatpush.msra.mxu0 0.0
  %553 = vmatpush.msra.mxu0 0.0
  %554 = vmatpush.msra.mxu0 0.0
  %555 = vmatpush.msra.mxu0 0.0
  %556 = vmatpush.msra.mxu0 0.0
  %557 = vmatpush.msra.mxu0 0.0
  %558 = vmatpush.msra.mxu0 0.0
  %559 = vmatpush.msra.mxu0 0.0
  %560 = vmatpush.msra.mxu0 %v454
  %561 = vmatpush.msra.mxu0 %v453
  %562 = vmatpush.msra.mxu0 %v452
  %563 = vmatpush.msra.mxu0 %v451
  %564 = vmatmul.f32.gmra.mxu0 %v546
  %v565 = vpop.f32.mrf.mxu0
  %v566 = vadd.f32 %v430, %v565
  %567 = vdwg.mxu0
  %v568 = vtanh.pop %v566
  %v569 = vsub.f32 %v568, %v516
  %571 = vrot.lane.b32.xlu0 %v569, 32
  %v572 = vpop.permute.xlu0 %571
  %v574 = vmul.f32 %v542, %v572
  %v575 = vadd.f32 %v513, %v574
  %577 = vrot.lane.b32.xlu0 %v575, 96
  %v578 = vpop.permute.xlu0 %577
  %v579 = vsel %vm455, %v578, 0
  %581 = vmatpush.msra.mxu0 0.0
  %582 = vmatpush.msra.mxu0 0.0
  %583 = vmatpush.msra.mxu0 0.0
  %584 = vmatpush.msra.mxu0 0.0
  %585 = vmatpush.msra.mxu0 0.0
  %586 = vmatpush.msra.mxu0 0.0
  %587 = vmatpush.msra.mxu0 0.0
  %588 = vmatpush.msra.mxu0 0.0
  %589 = vmatpush.msra.mxu0 0.0
  %590 = vmatpush.msra.mxu0 0.0
  %591 = vmatpush.msra.mxu0 0.0
  %592 = vmatpush.msra.mxu0 0.0
  %593 = vmatpush.msra.mxu0 %v450
  %594 = vmatpush.msra.mxu0 %v449
  %595 = vmatpush.msra.mxu0 %v448
  %596 = vmatpush.msra.mxu0 %v447
  %597 = vmatmul.f32.gmra.mxu0 %v579
  %v598 = vpop.f32.mrf.mxu0
  %v599 = vadd.f32 %v390, %v598
  %600 = vdwg.mxu0
  %v601 = vmul.f32 %v599, 0.5
  %v602 = vtanh.pop %v601
  %v603 = vadd.f32 %v602, 1.0
  %v604 = vmul.f32 %v603, 0.5
  %v606 = vmul.f32 %v604, %v578
  %v608 = vsel %vm455, %v606, 0
  %610 = vmatpush.msra.mxu0 0.0
  %611 = vmatpush.msra.mxu0 0.0
  %612 = vmatpush.msra.mxu0 0.0
  %613 = vmatpush.msra.mxu0 0.0
  %614 = vmatpush.msra.mxu0 0.0
  %615 = vmatpush.msra.mxu0 0.0
  %616 = vmatpush.msra.mxu0 0.0
  %617 = vmatpush.msra.mxu0 0.0
  %618 = vmatpush.msra.mxu0 0.0
  %619 = vmatpush.msra.mxu0 0.0
  %620 = vmatpush.msra.mxu0 0.0
  %621 = vmatpush.msra.mxu0 0.0
  %622 = vmatpush.msra.mxu0 %v454
  %623 = vmatpush.msra.mxu0 %v453
  %624 = vmatpush.msra.mxu0 %v452
  %625 = vmatpush.msra.mxu0 %v451
  %626 = vmatmul.f32.gmra.mxu0 %v608
  %v627 = vpop.f32.mrf.mxu0
  %v628 = vadd.f32 %v433, %v627
  %629 = vdwg.mxu0
  %v630 = vtanh.pop %v628
  %v631 = vsub.f32 %v630, %v578
  %633 = vrot.lane.b32.xlu0 %v631, 32
  %v634 = vpop.permute.xlu0 %633
  %v636 = vmul.f32 %v604, %v634
  %v637 = vadd.f32 %v575, %v636
  %639 = vrot.lane.b32.xlu0 %v637, 96
  %v640 = vpop.permute.xlu0 %639
  %v641 = vsel %vm455, %v640, 0
  %643 = vmatpush.msra.mxu0 0.0
  %644 = vmatpush.msra.mxu0 0.0
  %645 = vmatpush.msra.mxu0 0.0
  %646 = vmatpush.msra.mxu0 0.0
  %647 = vmatpush.msra.mxu0 0.0
  %648 = vmatpush.msra.mxu0 0.0
  %649 = vmatpush.msra.mxu0 0.0
  %650 = vmatpush.msra.mxu0 0.0
  %651 = vmatpush.msra.mxu0 0.0
  %652 = vmatpush.msra.mxu0 0.0
  %653 = vmatpush.msra.mxu0 0.0
  %654 = vmatpush.msra.mxu0 0.0
  %655 = vmatpush.msra.mxu0 %v450
  %656 = vmatpush.msra.mxu0 %v449
  %657 = vmatpush.msra.mxu0 %v448
  %658 = vmatpush.msra.mxu0 %v447
  %659 = vmatmul.f32.gmra.mxu0 %v641
  %v660 = vpop.f32.mrf.mxu0
  %v661 = vadd.f32 %v393, %v660
  %662 = vdwg.mxu0
  %v663 = vmul.f32 %v661, 0.5
  %v664 = vtanh.pop %v663
  %v665 = vadd.f32 %v664, 1.0
  %v666 = vmul.f32 %v665, 0.5
  %v668 = vmul.f32 %v666, %v640
  %v670 = vsel %vm455, %v668, 0
  %672 = vmatpush.msra.mxu0 0.0
  %673 = vmatpush.msra.mxu0 0.0
  %674 = vmatpush.msra.mxu0 0.0
  %675 = vmatpush.msra.mxu0 0.0
  %676 = vmatpush.msra.mxu0 0.0
  %677 = vmatpush.msra.mxu0 0.0
  %678 = vmatpush.msra.mxu0 0.0
  %679 = vmatpush.msra.mxu0 0.0
  %680 = vmatpush.msra.mxu0 0.0
  %681 = vmatpush.msra.mxu0 0.0
  %682 = vmatpush.msra.mxu0 0.0
  %683 = vmatpush.msra.mxu0 0.0
  %684 = vmatpush.msra.mxu0 %v454
  %685 = vmatpush.msra.mxu0 %v453
  %686 = vmatpush.msra.mxu0 %v452
  %687 = vmatpush.msra.mxu0 %v451
  %688 = vmatmul.f32.gmra.mxu0 %v670
  %v689 = vpop.f32.mrf.mxu0
  %v690 = vadd.f32 %v436, %v689
  %691 = vdwg.mxu0
  %v692 = vtanh.pop %v690
  %v693 = vsub.f32 %v692, %v640
  %695 = vrot.lane.b32.xlu0 %v693, 32
  %v696 = vpop.permute.xlu0 %695
  %v698 = vmul.f32 %v666, %v696
  %v699 = vadd.f32 %v637, %v698
  %701 = vrot.lane.b32.xlu0 %v699, 96
  %v702 = vpop.permute.xlu0 %701
  %v703 = vsel %vm455, %v702, 0
  %705 = vmatpush.msra.mxu0 0.0
  %706 = vmatpush.msra.mxu0 0.0
  %707 = vmatpush.msra.mxu0 0.0
  %708 = vmatpush.msra.mxu0 0.0
  %709 = vmatpush.msra.mxu0 0.0
  %710 = vmatpush.msra.mxu0 0.0
  %711 = vmatpush.msra.mxu0 0.0
  %712 = vmatpush.msra.mxu0 0.0
  %713 = vmatpush.msra.mxu0 0.0
  %714 = vmatpush.msra.mxu0 0.0
  %715 = vmatpush.msra.mxu0 0.0
  %716 = vmatpush.msra.mxu0 0.0
  %717 = vmatpush.msra.mxu0 %v450
  %718 = vmatpush.msra.mxu0 %v449
  %719 = vmatpush.msra.mxu0 %v448
  %720 = vmatpush.msra.mxu0 %v447
  %721 = vmatmul.f32.gmra.mxu0 %v703
  %v722 = vpop.f32.mrf.mxu0
  %v723 = vadd.f32 %v396, %v722
  %724 = vdwg.mxu0
  %v725 = vmul.f32 %v723, 0.5
  %v726 = vtanh.pop %v725
  %v727 = vadd.f32 %v726, 1.0
  %v728 = vmul.f32 %v727, 0.5
  %v730 = vmul.f32 %v728, %v702
  %v732 = vsel %vm455, %v730, 0
  %734 = vmatpush.msra.mxu0 0.0
  %735 = vmatpush.msra.mxu0 0.0
  %736 = vmatpush.msra.mxu0 0.0
  %737 = vmatpush.msra.mxu0 0.0
  %738 = vmatpush.msra.mxu0 0.0
  %739 = vmatpush.msra.mxu0 0.0
  %740 = vmatpush.msra.mxu0 0.0
  %741 = vmatpush.msra.mxu0 0.0
  %742 = vmatpush.msra.mxu0 0.0
  %743 = vmatpush.msra.mxu0 0.0
  %744 = vmatpush.msra.mxu0 0.0
  %745 = vmatpush.msra.mxu0 0.0
  %746 = vmatpush.msra.mxu0 %v454
  %747 = vmatpush.msra.mxu0 %v453
  %748 = vmatpush.msra.mxu0 %v452
  %749 = vmatpush.msra.mxu0 %v451
  %750 = vmatmul.f32.gmra.mxu0 %v732
  %v751 = vpop.f32.mrf.mxu0
  %v752 = vadd.f32 %v439, %v751
  %753 = vdwg.mxu0
  %v754 = vtanh.pop %v752
  %v755 = vsub.f32 %v754, %v702
  %757 = vrot.lane.b32.xlu0 %v755, 32
  %v758 = vpop.permute.xlu0 %757
  %v760 = vmul.f32 %v728, %v758
  %v761 = vadd.f32 %v699, %v760
  %763 = vrot.lane.b32.xlu0 %v761, 96
  %v764 = vpop.permute.xlu0 %763
  %v765 = vsel %vm455, %v764, 0
  %767 = vmatpush.msra.mxu0 0.0
  %768 = vmatpush.msra.mxu0 0.0
  %769 = vmatpush.msra.mxu0 0.0
  %770 = vmatpush.msra.mxu0 0.0
  %771 = vmatpush.msra.mxu0 0.0
  %772 = vmatpush.msra.mxu0 0.0
  %773 = vmatpush.msra.mxu0 0.0
  %774 = vmatpush.msra.mxu0 0.0
  %775 = vmatpush.msra.mxu0 0.0
  %776 = vmatpush.msra.mxu0 0.0
  %777 = vmatpush.msra.mxu0 0.0
  %778 = vmatpush.msra.mxu0 0.0
  %779 = vmatpush.msra.mxu0 %v450
  %780 = vmatpush.msra.mxu0 %v449
  %781 = vmatpush.msra.mxu0 %v448
  %782 = vmatpush.msra.mxu0 %v447
  %783 = vmatmul.f32.gmra.mxu0 %v765
  %v784 = vpop.f32.mrf.mxu0
  %v785 = vadd.f32 %v399, %v784
  %786 = vdwg.mxu0
  %v787 = vmul.f32 %v785, 0.5
  %v788 = vtanh.pop %v787
  %v789 = vadd.f32 %v788, 1.0
  %v790 = vmul.f32 %v789, 0.5
  %v792 = vmul.f32 %v790, %v764
  %v794 = vsel %vm455, %v792, 0
  %796 = vmatpush.msra.mxu0 0.0
  %797 = vmatpush.msra.mxu0 0.0
  %798 = vmatpush.msra.mxu0 0.0
  %799 = vmatpush.msra.mxu0 0.0
  %800 = vmatpush.msra.mxu0 0.0
  %801 = vmatpush.msra.mxu0 0.0
  %802 = vmatpush.msra.mxu0 0.0
  %803 = vmatpush.msra.mxu0 0.0
  %804 = vmatpush.msra.mxu0 0.0
  %805 = vmatpush.msra.mxu0 0.0
  %806 = vmatpush.msra.mxu0 0.0
  %807 = vmatpush.msra.mxu0 0.0
  %808 = vmatpush.msra.mxu0 %v454
  %809 = vmatpush.msra.mxu0 %v453
  %810 = vmatpush.msra.mxu0 %v452
  %811 = vmatpush.msra.mxu0 %v451
  %812 = vmatmul.f32.gmra.mxu0 %v794
  %v813 = vpop.f32.mrf.mxu0
  %v814 = vadd.f32 %v442, %v813
  %815 = vdwg.mxu0
  %v816 = vtanh.pop %v814
  %v817 = vsub.f32 %v816, %v764
  %819 = vrot.lane.b32.xlu0 %v817, 32
  %v820 = vpop.permute.xlu0 %819
  %v822 = vmul.f32 %v790, %v820
  %v823 = vadd.f32 %v761, %v822
  %825 = vrot.lane.b32.xlu0 %v823, 96
  %v826 = vpop.permute.xlu0 %825
  %v827 = vsel %vm455, %v826, 0
  %829 = vmatpush.msra.mxu0 0.0
  %830 = vmatpush.msra.mxu0 0.0
  %831 = vmatpush.msra.mxu0 0.0
  %832 = vmatpush.msra.mxu0 0.0
  %833 = vmatpush.msra.mxu0 0.0
  %834 = vmatpush.msra.mxu0 0.0
  %835 = vmatpush.msra.mxu0 0.0
  %836 = vmatpush.msra.mxu0 0.0
  %837 = vmatpush.msra.mxu0 0.0
  %838 = vmatpush.msra.mxu0 0.0
  %839 = vmatpush.msra.mxu0 0.0
  %840 = vmatpush.msra.mxu0 0.0
  %841 = vmatpush.msra.mxu0 %v450
  %842 = vmatpush.msra.mxu0 %v449
  %843 = vmatpush.msra.mxu0 %v448
  %844 = vmatpush.msra.mxu0 %v447
  %845 = vmatmul.f32.gmra.mxu0 %v827
  %v846 = vpop.f32.mrf.mxu0
  %v847 = vadd.f32 %v402, %v846
  %848 = vdwg.mxu0
  %v849 = vmul.f32 %v847, 0.5
  %v850 = vtanh.pop %v849
  %v851 = vadd.f32 %v850, 1.0
  %v852 = vmul.f32 %v851, 0.5
  %v854 = vmul.f32 %v852, %v826
  %v856 = vsel %vm455, %v854, 0
  %858 = vmatpush.msra.mxu0 0.0
  %859 = vmatpush.msra.mxu0 0.0
  %860 = vmatpush.msra.mxu0 0.0
  %861 = vmatpush.msra.mxu0 0.0
  %862 = vmatpush.msra.mxu0 0.0
  %863 = vmatpush.msra.mxu0 0.0
  %864 = vmatpush.msra.mxu0 0.0
  %865 = vmatpush.msra.mxu0 0.0
  %866 = vmatpush.msra.mxu0 0.0
  %867 = vmatpush.msra.mxu0 0.0
  %868 = vmatpush.msra.mxu0 0.0
  %869 = vmatpush.msra.mxu0 0.0
  %870 = vmatpush.msra.mxu0 %v454
  %871 = vmatpush.msra.mxu0 %v453
  %872 = vmatpush.msra.mxu0 %v452
  %873 = vmatpush.msra.mxu0 %v451
  %874 = vmatmul.f32.gmra.mxu0 %v856
  %v875 = vpop.f32.mrf.mxu0
  %v876 = vadd.f32 %v445, %v875
  %877 = vdwg.mxu0
  %v878 = vtanh.pop %v876
  %v879 = vsub.f32 %v878, %v826
  %881 = vrot.lane.b32.xlu0 %v879, 32
  %v882 = vpop.permute.xlu0 %881
  %v884 = vmul.f32 %v852, %v882
  %v885 = vadd.f32 %v823, %v884
  %v886 = vld [vmem:[%s9] sm:$0xff]
  %v887 = vld [vmem:[%s9 + $0x8] sm:$0xff]
  %v888 = vld [vmem:[%s9 + $0x10] sm:$0xff]
  %v889 = vld [vmem:[%s9 + $0x18] sm:$0xff]
  %v890 = vld [vmem:[%s13] sm:$0x1]
  %v892 = vperm.slane %v890, 0
  %895 = vrot.lane.b32.xlu0 %v885, 96
  %v896 = vpop.permute.xlu0 %895
  %v897 = vsel %vm455, %v896, 0
  %899 = vmatpush.msra.mxu0 0.0
  %900 = vmatpush.msra.mxu0 0.0
  %901 = vmatpush.msra.mxu0 0.0
  %902 = vmatpush.msra.mxu0 0.0
  %903 = vmatpush.msra.mxu0 0.0
  %904 = vmatpush.msra.mxu0 0.0
  %905 = vmatpush.msra.mxu0 0.0
  %906 = vmatpush.msra.mxu0 0.0
  %907 = vmatpush.msra.mxu0 0.0
  %908 = vmatpush.msra.mxu0 0.0
  %909 = vmatpush.msra.mxu0 0.0
  %910 = vmatpush.msra.mxu0 0.0
  %911 = vmatpush.msra.mxu0 %v889
  %912 = vmatpush.msra.mxu0 %v888
  %913 = vmatpush.msra.mxu0 %v887
  %914 = vmatpush.msra.mxu0 %v886
  %915 = vmatmul.f32.gmra.mxu0 %v517
  %v916 = vpop.f32.mrf.mxu0
  %v917 = vadd.f32 %v892, %v916
  %918 = vmatmul.f32.gmra.mxu0 %v579
  %v919 = vpop.f32.mrf.mxu0
  %v920 = vadd.f32 %v892, %v919
  %921 = vmatmul.f32.gmra.mxu0 %v641
  %v922 = vpop.f32.mrf.mxu0
  %v923 = vadd.f32 %v892, %v922
  %924 = vmatmul.f32.gmra.mxu0 %v703
  %v925 = vpop.f32.mrf.mxu0
  %v926 = vadd.f32 %v892, %v925
  %927 = vmatmul.f32.gmra.mxu0 %v765
  %v928 = vpop.f32.mrf.mxu0
  %v929 = vadd.f32 %v892, %v928
  %930 = vmatmul.f32.gmra.mxu0 %v827
  %v931 = vpop.f32.mrf.mxu0
  %v932 = vadd.f32 %v892, %v931
  %933 = vmatmul.f32.gmra.mxu0 %v897
  %v934 = vpop.f32.mrf.mxu0
  %v935 = vadd.f32 %v892, %v934
  %936 = vdwg.mxu0
  %v937 = vld [vmem:[%s10] sm:$0xff]
  %v938 = vld [vmem:[%s10 + $0x8] sm:$0xff]
  %v939 = vld [vmem:[%s10 + $0x10] sm:$0xff]
  %v940 = vld [vmem:[%s10 + $0x18] sm:$0xff]
  %v941 = vld [vmem:[%s14] sm:$0x1]
  %v943 = vperm.slane %v941, 0
  %945 = vmatpush.msra.mxu0 0.0
  %946 = vmatpush.msra.mxu0 0.0
  %947 = vmatpush.msra.mxu0 0.0
  %948 = vmatpush.msra.mxu0 0.0
  %949 = vmatpush.msra.mxu0 0.0
  %950 = vmatpush.msra.mxu0 0.0
  %951 = vmatpush.msra.mxu0 0.0
  %952 = vmatpush.msra.mxu0 0.0
  %953 = vmatpush.msra.mxu0 0.0
  %954 = vmatpush.msra.mxu0 0.0
  %955 = vmatpush.msra.mxu0 0.0
  %956 = vmatpush.msra.mxu0 0.0
  %957 = vmatpush.msra.mxu0 %v940
  %958 = vmatpush.msra.mxu0 %v939
  %959 = vmatpush.msra.mxu0 %v938
  %960 = vmatpush.msra.mxu0 %v937
  %961 = vmatmul.f32.gmra.mxu0 %v517
  %v962 = vpop.f32.mrf.mxu0
  %v963 = vadd.f32 %v943, %v962
  %964 = vmatmul.f32.gmra.mxu0 %v579
  %v965 = vpop.f32.mrf.mxu0
  %v966 = vadd.f32 %v943, %v965
  %967 = vmatmul.f32.gmra.mxu0 %v641
  %v968 = vpop.f32.mrf.mxu0
  %v969 = vadd.f32 %v943, %v968
  %970 = vmatmul.f32.gmra.mxu0 %v703
  %v971 = vpop.f32.mrf.mxu0
  %v972 = vadd.f32 %v943, %v971
  %973 = vmatmul.f32.gmra.mxu0 %v765
  %v974 = vpop.f32.mrf.mxu0
  %v975 = vadd.f32 %v943, %v974
  %976 = vmatmul.f32.gmra.mxu0 %v827
  %v977 = vpop.f32.mrf.mxu0
  %v978 = vadd.f32 %v943, %v977
  %979 = vmatmul.f32.gmra.mxu0 %v897
  %v980 = vpop.f32.mrf.mxu0
  %v981 = vadd.f32 %v943, %v980
  %982 = vdwg.mxu0
  %v983 = vld [vmem:[%s11] sm:$0xff]
  %v984 = vld [vmem:[%s11 + $0x8] sm:$0xff]
  %v985 = vld [vmem:[%s11 + $0x10] sm:$0xff]
  %v986 = vld [vmem:[%s11 + $0x18] sm:$0xff]
  %v987 = vld [vmem:[%s12] sm:$0xff]
  %v988 = vld [vmem:[%s12 + $0x8] sm:$0xff]
  %v989 = vld [vmem:[%s12 + $0x10] sm:$0xff]
  %v990 = vld [vmem:[%s12 + $0x18] sm:$0xff]
  %991 = vmatpush.msra.mxu0 0.0
  %992 = vmatpush.msra.mxu0 0.0
  %993 = vmatpush.msra.mxu0 0.0
  %994 = vmatpush.msra.mxu0 0.0
  %995 = vmatpush.msra.mxu0 0.0
  %996 = vmatpush.msra.mxu0 0.0
  %997 = vmatpush.msra.mxu0 0.0
  %998 = vmatpush.msra.mxu0 0.0
  %999 = vmatpush.msra.mxu0 0.0
  %1000 = vmatpush.msra.mxu0 0.0
  %1001 = vmatpush.msra.mxu0 0.0
  %1002 = vmatpush.msra.mxu0 0.0
  %1003 = vmatpush.msra.mxu0 %v986
  %1004 = vmatpush.msra.mxu0 %v985
  %1005 = vmatpush.msra.mxu0 %v984
  %1006 = vmatpush.msra.mxu0 %v983
  %1007 = vmatmul.f32.gmra.mxu0 %v457
  %v1008 = vpop.f32.mrf.mxu0
  %v1009 = vadd.f32 %v917, %v1008
  %1010 = vdwg.mxu0
  %v1011 = vmul.f32 %v1009, 0.5
  %v1012 = vtanh.pop %v1011
  %v1013 = vadd.f32 %v1012, 1.0
  %v1014 = vmul.f32 %v1013, 0.5
  %v1015 = vmul.f32 %v1014, 0.0
  %v1017 = vsel %vm455, %v1015, 0
  %1019 = vmatpush.msra.mxu0 0.0
  %1020 = vmatpush.msra.mxu0 0.0
  %1021 = vmatpush.msra.mxu0 0.0
  %1022 = vmatpush.msra.mxu0 0.0
  %1023 = vmatpush.msra.mxu0 0.0
  %1024 = vmatpush.msra.mxu0 0.0
  %1025 = vmatpush.msra.mxu0 0.0
  %1026 = vmatpush.msra.mxu0 0.0
  %1027 = vmatpush.msra.mxu0 0.0
  %1028 = vmatpush.msra.mxu0 0.0
  %1029 = vmatpush.msra.mxu0 0.0
  %1030 = vmatpush.msra.mxu0 0.0
  %1031 = vmatpush.msra.mxu0 %v990
  %1032 = vmatpush.msra.mxu0 %v989
  %1033 = vmatpush.msra.mxu0 %v988
  %1034 = vmatpush.msra.mxu0 %v987
  %1035 = vmatmul.f32.gmra.mxu0 %v1017
  %v1036 = vpop.f32.mrf.mxu0
  %v1037 = vadd.f32 %v963, %v1036
  %1038 = vdwg.mxu0
  %v1039 = vtanh.pop %v1037
  %1041 = vrot.lane.b32.xlu0 %v1039, 32
  %v1042 = vpop.permute.xlu0 %1041
  %v1044 = vmul.f32 %v1014, %v1042
  %v1045 = vadd.f32 %v1044, 0.0
  %1047 = vrot.lane.b32.xlu0 %v1045, 96
  %v1048 = vpop.permute.xlu0 %1047
  %v1049 = vsel %vm455, %v1048, 0
  %1051 = vmatpush.msra.mxu0 0.0
  %1052 = vmatpush.msra.mxu0 0.0
  %1053 = vmatpush.msra.mxu0 0.0
  %1054 = vmatpush.msra.mxu0 0.0
  %1055 = vmatpush.msra.mxu0 0.0
  %1056 = vmatpush.msra.mxu0 0.0
  %1057 = vmatpush.msra.mxu0 0.0
  %1058 = vmatpush.msra.mxu0 0.0
  %1059 = vmatpush.msra.mxu0 0.0
  %1060 = vmatpush.msra.mxu0 0.0
  %1061 = vmatpush.msra.mxu0 0.0
  %1062 = vmatpush.msra.mxu0 0.0
  %1063 = vmatpush.msra.mxu0 %v986
  %1064 = vmatpush.msra.mxu0 %v985
  %1065 = vmatpush.msra.mxu0 %v984
  %1066 = vmatpush.msra.mxu0 %v983
  %1067 = vmatmul.f32.gmra.mxu0 %v1049
  %v1068 = vpop.f32.mrf.mxu0
  %v1069 = vadd.f32 %v920, %v1068
  %1070 = vdwg.mxu0
  %v1071 = vmul.f32 %v1069, 0.5
  %v1072 = vtanh.pop %v1071
  %v1073 = vadd.f32 %v1072, 1.0
  %v1074 = vmul.f32 %v1073, 0.5
  %v1076 = vmul.f32 %v1074, %v1048
  %v1078 = vsel %vm455, %v1076, 0
  %1080 = vmatpush.msra.mxu0 0.0
  %1081 = vmatpush.msra.mxu0 0.0
  %1082 = vmatpush.msra.mxu0 0.0
  %1083 = vmatpush.msra.mxu0 0.0
  %1084 = vmatpush.msra.mxu0 0.0
  %1085 = vmatpush.msra.mxu0 0.0
  %1086 = vmatpush.msra.mxu0 0.0
  %1087 = vmatpush.msra.mxu0 0.0
  %1088 = vmatpush.msra.mxu0 0.0
  %1089 = vmatpush.msra.mxu0 0.0
  %1090 = vmatpush.msra.mxu0 0.0
  %1091 = vmatpush.msra.mxu0 0.0
  %1092 = vmatpush.msra.mxu0 %v990
  %1093 = vmatpush.msra.mxu0 %v989
  %1094 = vmatpush.msra.mxu0 %v988
  %1095 = vmatpush.msra.mxu0 %v987
  %1096 = vmatmul.f32.gmra.mxu0 %v1078
  %v1097 = vpop.f32.mrf.mxu0
  %v1098 = vadd.f32 %v966, %v1097
  %1099 = vdwg.mxu0
  %v1100 = vtanh.pop %v1098
  %v1101 = vsub.f32 %v1100, %v1048
  %1103 = vrot.lane.b32.xlu0 %v1101, 32
  %v1104 = vpop.permute.xlu0 %1103
  %v1106 = vmul.f32 %v1074, %v1104
  %v1107 = vadd.f32 %v1045, %v1106
  %1109 = vrot.lane.b32.xlu0 %v1107, 96
  %v1110 = vpop.permute.xlu0 %1109
  %v1111 = vsel %vm455, %v1110, 0
  %1113 = vmatpush.msra.mxu0 0.0
  %1114 = vmatpush.msra.mxu0 0.0
  %1115 = vmatpush.msra.mxu0 0.0
  %1116 = vmatpush.msra.mxu0 0.0
  %1117 = vmatpush.msra.mxu0 0.0
  %1118 = vmatpush.msra.mxu0 0.0
  %1119 = vmatpush.msra.mxu0 0.0
  %1120 = vmatpush.msra.mxu0 0.0
  %1121 = vmatpush.msra.mxu0 0.0
  %1122 = vmatpush.msra.mxu0 0.0
  %1123 = vmatpush.msra.mxu0 0.0
  %1124 = vmatpush.msra.mxu0 0.0
  %1125 = vmatpush.msra.mxu0 %v986
  %1126 = vmatpush.msra.mxu0 %v985
  %1127 = vmatpush.msra.mxu0 %v984
  %1128 = vmatpush.msra.mxu0 %v983
  %1129 = vmatmul.f32.gmra.mxu0 %v1111
  %v1130 = vpop.f32.mrf.mxu0
  %v1131 = vadd.f32 %v923, %v1130
  %1132 = vdwg.mxu0
  %v1133 = vmul.f32 %v1131, 0.5
  %v1134 = vtanh.pop %v1133
  %v1135 = vadd.f32 %v1134, 1.0
  %v1136 = vmul.f32 %v1135, 0.5
  %v1138 = vmul.f32 %v1136, %v1110
  %v1140 = vsel %vm455, %v1138, 0
  %1142 = vmatpush.msra.mxu0 0.0
  %1143 = vmatpush.msra.mxu0 0.0
  %1144 = vmatpush.msra.mxu0 0.0
  %1145 = vmatpush.msra.mxu0 0.0
  %1146 = vmatpush.msra.mxu0 0.0
  %1147 = vmatpush.msra.mxu0 0.0
  %1148 = vmatpush.msra.mxu0 0.0
  %1149 = vmatpush.msra.mxu0 0.0
  %1150 = vmatpush.msra.mxu0 0.0
  %1151 = vmatpush.msra.mxu0 0.0
  %1152 = vmatpush.msra.mxu0 0.0
  %1153 = vmatpush.msra.mxu0 0.0
  %1154 = vmatpush.msra.mxu0 %v990
  %1155 = vmatpush.msra.mxu0 %v989
  %1156 = vmatpush.msra.mxu0 %v988
  %1157 = vmatpush.msra.mxu0 %v987
  %1158 = vmatmul.f32.gmra.mxu0 %v1140
  %v1159 = vpop.f32.mrf.mxu0
  %v1160 = vadd.f32 %v969, %v1159
  %1161 = vdwg.mxu0
  %v1162 = vtanh.pop %v1160
  %v1163 = vsub.f32 %v1162, %v1110
  %1165 = vrot.lane.b32.xlu0 %v1163, 32
  %v1166 = vpop.permute.xlu0 %1165
  %v1168 = vmul.f32 %v1136, %v1166
  %v1169 = vadd.f32 %v1107, %v1168
  %1171 = vrot.lane.b32.xlu0 %v1169, 96
  %v1172 = vpop.permute.xlu0 %1171
  %v1173 = vsel %vm455, %v1172, 0
  %1175 = vmatpush.msra.mxu0 0.0
  %1176 = vmatpush.msra.mxu0 0.0
  %1177 = vmatpush.msra.mxu0 0.0
  %1178 = vmatpush.msra.mxu0 0.0
  %1179 = vmatpush.msra.mxu0 0.0
  %1180 = vmatpush.msra.mxu0 0.0
  %1181 = vmatpush.msra.mxu0 0.0
  %1182 = vmatpush.msra.mxu0 0.0
  %1183 = vmatpush.msra.mxu0 0.0
  %1184 = vmatpush.msra.mxu0 0.0
  %1185 = vmatpush.msra.mxu0 0.0
  %1186 = vmatpush.msra.mxu0 0.0
  %1187 = vmatpush.msra.mxu0 %v986
  %1188 = vmatpush.msra.mxu0 %v985
  %1189 = vmatpush.msra.mxu0 %v984
  %1190 = vmatpush.msra.mxu0 %v983
  %1191 = vmatmul.f32.gmra.mxu0 %v1173
  %v1192 = vpop.f32.mrf.mxu0
  %v1193 = vadd.f32 %v926, %v1192
  %1194 = vdwg.mxu0
  %v1195 = vmul.f32 %v1193, 0.5
  %v1196 = vtanh.pop %v1195
  %v1197 = vadd.f32 %v1196, 1.0
  %v1198 = vmul.f32 %v1197, 0.5
  %v1200 = vmul.f32 %v1198, %v1172
  %v1202 = vsel %vm455, %v1200, 0
  %1204 = vmatpush.msra.mxu0 0.0
  %1205 = vmatpush.msra.mxu0 0.0
  %1206 = vmatpush.msra.mxu0 0.0
  %1207 = vmatpush.msra.mxu0 0.0
  %1208 = vmatpush.msra.mxu0 0.0
  %1209 = vmatpush.msra.mxu0 0.0
  %1210 = vmatpush.msra.mxu0 0.0
  %1211 = vmatpush.msra.mxu0 0.0
  %1212 = vmatpush.msra.mxu0 0.0
  %1213 = vmatpush.msra.mxu0 0.0
  %1214 = vmatpush.msra.mxu0 0.0
  %1215 = vmatpush.msra.mxu0 0.0
  %1216 = vmatpush.msra.mxu0 %v990
  %1217 = vmatpush.msra.mxu0 %v989
  %1218 = vmatpush.msra.mxu0 %v988
  %1219 = vmatpush.msra.mxu0 %v987
  %1220 = vmatmul.f32.gmra.mxu0 %v1202
  %v1221 = vpop.f32.mrf.mxu0
  %v1222 = vadd.f32 %v972, %v1221
  %1223 = vdwg.mxu0
  %v1224 = vtanh.pop %v1222
  %v1225 = vsub.f32 %v1224, %v1172
  %1227 = vrot.lane.b32.xlu0 %v1225, 32
  %v1228 = vpop.permute.xlu0 %1227
  %v1230 = vmul.f32 %v1198, %v1228
  %v1231 = vadd.f32 %v1169, %v1230
  %1233 = vrot.lane.b32.xlu0 %v1231, 96
  %v1234 = vpop.permute.xlu0 %1233
  %v1235 = vsel %vm455, %v1234, 0
  %1237 = vmatpush.msra.mxu0 0.0
  %1238 = vmatpush.msra.mxu0 0.0
  %1239 = vmatpush.msra.mxu0 0.0
  %1240 = vmatpush.msra.mxu0 0.0
  %1241 = vmatpush.msra.mxu0 0.0
  %1242 = vmatpush.msra.mxu0 0.0
  %1243 = vmatpush.msra.mxu0 0.0
  %1244 = vmatpush.msra.mxu0 0.0
  %1245 = vmatpush.msra.mxu0 0.0
  %1246 = vmatpush.msra.mxu0 0.0
  %1247 = vmatpush.msra.mxu0 0.0
  %1248 = vmatpush.msra.mxu0 0.0
  %1249 = vmatpush.msra.mxu0 %v986
  %1250 = vmatpush.msra.mxu0 %v985
  %1251 = vmatpush.msra.mxu0 %v984
  %1252 = vmatpush.msra.mxu0 %v983
  %1253 = vmatmul.f32.gmra.mxu0 %v1235
  %v1254 = vpop.f32.mrf.mxu0
  %v1255 = vadd.f32 %v929, %v1254
  %1256 = vdwg.mxu0
  %v1257 = vmul.f32 %v1255, 0.5
  %v1258 = vtanh.pop %v1257
  %v1259 = vadd.f32 %v1258, 1.0
  %v1260 = vmul.f32 %v1259, 0.5
  %v1262 = vmul.f32 %v1260, %v1234
  %v1264 = vsel %vm455, %v1262, 0
  %1266 = vmatpush.msra.mxu0 0.0
  %1267 = vmatpush.msra.mxu0 0.0
  %1268 = vmatpush.msra.mxu0 0.0
  %1269 = vmatpush.msra.mxu0 0.0
  %1270 = vmatpush.msra.mxu0 0.0
  %1271 = vmatpush.msra.mxu0 0.0
  %1272 = vmatpush.msra.mxu0 0.0
  %1273 = vmatpush.msra.mxu0 0.0
  %1274 = vmatpush.msra.mxu0 0.0
  %1275 = vmatpush.msra.mxu0 0.0
  %1276 = vmatpush.msra.mxu0 0.0
  %1277 = vmatpush.msra.mxu0 0.0
  %1278 = vmatpush.msra.mxu0 %v990
  %1279 = vmatpush.msra.mxu0 %v989
  %1280 = vmatpush.msra.mxu0 %v988
  %1281 = vmatpush.msra.mxu0 %v987
  %1282 = vmatmul.f32.gmra.mxu0 %v1264
  %v1283 = vpop.f32.mrf.mxu0
  %v1284 = vadd.f32 %v975, %v1283
  %1285 = vdwg.mxu0
  %v1286 = vtanh.pop %v1284
  %v1287 = vsub.f32 %v1286, %v1234
  %1289 = vrot.lane.b32.xlu0 %v1287, 32
  %v1290 = vpop.permute.xlu0 %1289
  %v1292 = vmul.f32 %v1260, %v1290
  %v1293 = vadd.f32 %v1231, %v1292
  %1295 = vrot.lane.b32.xlu0 %v1293, 96
  %v1296 = vpop.permute.xlu0 %1295
  %v1297 = vsel %vm455, %v1296, 0
  %1299 = vmatpush.msra.mxu0 0.0
  %1300 = vmatpush.msra.mxu0 0.0
  %1301 = vmatpush.msra.mxu0 0.0
  %1302 = vmatpush.msra.mxu0 0.0
  %1303 = vmatpush.msra.mxu0 0.0
  %1304 = vmatpush.msra.mxu0 0.0
  %1305 = vmatpush.msra.mxu0 0.0
  %1306 = vmatpush.msra.mxu0 0.0
  %1307 = vmatpush.msra.mxu0 0.0
  %1308 = vmatpush.msra.mxu0 0.0
  %1309 = vmatpush.msra.mxu0 0.0
  %1310 = vmatpush.msra.mxu0 0.0
  %1311 = vmatpush.msra.mxu0 %v986
  %1312 = vmatpush.msra.mxu0 %v985
  %1313 = vmatpush.msra.mxu0 %v984
  %1314 = vmatpush.msra.mxu0 %v983
  %1315 = vmatmul.f32.gmra.mxu0 %v1297
  %v1316 = vpop.f32.mrf.mxu0
  %v1317 = vadd.f32 %v932, %v1316
  %1318 = vdwg.mxu0
  %v1319 = vmul.f32 %v1317, 0.5
  %v1320 = vtanh.pop %v1319
  %v1321 = vadd.f32 %v1320, 1.0
  %v1322 = vmul.f32 %v1321, 0.5
  %v1324 = vmul.f32 %v1322, %v1296
  %v1326 = vsel %vm455, %v1324, 0
  %1328 = vmatpush.msra.mxu0 0.0
  %1329 = vmatpush.msra.mxu0 0.0
  %1330 = vmatpush.msra.mxu0 0.0
  %1331 = vmatpush.msra.mxu0 0.0
  %1332 = vmatpush.msra.mxu0 0.0
  %1333 = vmatpush.msra.mxu0 0.0
  %1334 = vmatpush.msra.mxu0 0.0
  %1335 = vmatpush.msra.mxu0 0.0
  %1336 = vmatpush.msra.mxu0 0.0
  %1337 = vmatpush.msra.mxu0 0.0
  %1338 = vmatpush.msra.mxu0 0.0
  %1339 = vmatpush.msra.mxu0 0.0
  %1340 = vmatpush.msra.mxu0 %v990
  %1341 = vmatpush.msra.mxu0 %v989
  %1342 = vmatpush.msra.mxu0 %v988
  %1343 = vmatpush.msra.mxu0 %v987
  %1344 = vmatmul.f32.gmra.mxu0 %v1326
  %v1345 = vpop.f32.mrf.mxu0
  %v1346 = vadd.f32 %v978, %v1345
  %1347 = vdwg.mxu0
  %v1348 = vtanh.pop %v1346
  %v1349 = vsub.f32 %v1348, %v1296
  %1351 = vrot.lane.b32.xlu0 %v1349, 32
  %v1352 = vpop.permute.xlu0 %1351
  %v1354 = vmul.f32 %v1322, %v1352
  %v1355 = vadd.f32 %v1293, %v1354
  %1357 = vrot.lane.b32.xlu0 %v1355, 96
  %v1358 = vpop.permute.xlu0 %1357
  %v1359 = vsel %vm455, %v1358, 0
  %1361 = vmatpush.msra.mxu0 0.0
  %1362 = vmatpush.msra.mxu0 0.0
  %1363 = vmatpush.msra.mxu0 0.0
  %1364 = vmatpush.msra.mxu0 0.0
  %1365 = vmatpush.msra.mxu0 0.0
  %1366 = vmatpush.msra.mxu0 0.0
  %1367 = vmatpush.msra.mxu0 0.0
  %1368 = vmatpush.msra.mxu0 0.0
  %1369 = vmatpush.msra.mxu0 0.0
  %1370 = vmatpush.msra.mxu0 0.0
  %1371 = vmatpush.msra.mxu0 0.0
  %1372 = vmatpush.msra.mxu0 0.0
  %1373 = vmatpush.msra.mxu0 %v986
  %1374 = vmatpush.msra.mxu0 %v985
  %1375 = vmatpush.msra.mxu0 %v984
  %1376 = vmatpush.msra.mxu0 %v983
  %1377 = vmatmul.f32.gmra.mxu0 %v1359
  %v1378 = vpop.f32.mrf.mxu0
  %v1379 = vadd.f32 %v935, %v1378
  %1380 = vdwg.mxu0
  %v1381 = vmul.f32 %v1379, 0.5
  %v1382 = vtanh.pop %v1381
  %v1383 = vadd.f32 %v1382, 1.0
  %v1384 = vmul.f32 %v1383, 0.5
  %v1386 = vmul.f32 %v1384, %v1358
  %v1388 = vsel %vm455, %v1386, 0
  %1390 = vmatpush.msra.mxu0 0.0
  %1391 = vmatpush.msra.mxu0 0.0
  %1392 = vmatpush.msra.mxu0 0.0
  %1393 = vmatpush.msra.mxu0 0.0
  %1394 = vmatpush.msra.mxu0 0.0
  %1395 = vmatpush.msra.mxu0 0.0
  %1396 = vmatpush.msra.mxu0 0.0
  %1397 = vmatpush.msra.mxu0 0.0
  %1398 = vmatpush.msra.mxu0 0.0
  %1399 = vmatpush.msra.mxu0 0.0
  %1400 = vmatpush.msra.mxu0 0.0
  %1401 = vmatpush.msra.mxu0 0.0
  %1402 = vmatpush.msra.mxu0 %v990
  %1403 = vmatpush.msra.mxu0 %v989
  %1404 = vmatpush.msra.mxu0 %v988
  %1405 = vmatpush.msra.mxu0 %v987
  %1406 = vmatmul.f32.gmra.mxu0 %v1388
  %v1407 = vpop.f32.mrf.mxu0
  %v1408 = vadd.f32 %v981, %v1407
  %1409 = vdwg.mxu0
  %v1410 = vtanh.pop %v1408
  %v1411 = vsub.f32 %v1410, %v1358
  %1413 = vrot.lane.b32.xlu0 %v1411, 32
  %v1414 = vpop.permute.xlu0 %1413
  %v1416 = vmul.f32 %v1384, %v1414
  %v1417 = vadd.f32 %v1355, %v1416
  %v1418 = vld [vmem:[%s15] sm:$0xff]
  %v1419 = vld [vmem:[%s15 + $0x8] sm:$0xff]
  %v1420 = vld [vmem:[%s15 + $0x10] sm:$0xff]
  %v1421 = vld [vmem:[%s15 + $0x18] sm:$0xff]
  %v1422 = vld [vmem:[%s16] sm:$0x1]
  %v1424 = vperm.slane %v1422, 0
  %1427 = vrot.lane.b32.xlu0 %v1417, 96
  %v1428 = vpop.permute.xlu0 %1427
  %v1429 = vsel %vm455, %v1428, 0
  %1431 = vmatpush.msra.mxu0 0.0
  %1432 = vmatpush.msra.mxu0 0.0
  %1433 = vmatpush.msra.mxu0 0.0
  %1434 = vmatpush.msra.mxu0 0.0
  %1435 = vmatpush.msra.mxu0 0.0
  %1436 = vmatpush.msra.mxu0 0.0
  %1437 = vmatpush.msra.mxu0 0.0
  %1438 = vmatpush.msra.mxu0 0.0
  %1439 = vmatpush.msra.mxu0 0.0
  %1440 = vmatpush.msra.mxu0 0.0
  %1441 = vmatpush.msra.mxu0 0.0
  %1442 = vmatpush.msra.mxu0 0.0
  %1443 = vmatpush.msra.mxu0 %v1421
  %1444 = vmatpush.msra.mxu0 %v1420
  %1445 = vmatpush.msra.mxu0 %v1419
  %1446 = vmatpush.msra.mxu0 %v1418
  %1447 = vmatmul.f32.gmra.mxu0 %v1429
  %v1448 = vpop.f32.mrf.mxu0
  %v1449 = vadd.f32 %v1424, %v1448
  %1450 = vdwg.mxu0
  %v1451 = vmax.f32 %v1449, 0.0
  %v1452 = vld [vmem:[%s17] sm:$0xff]
  %v1453 = vld [vmem:[%s17 + $0x8] sm:$0xff]
  %v1454 = vld [vmem:[%s17 + $0x10] sm:$0xff]
  %v1455 = vld [vmem:[%s17 + $0x18] sm:$0xff]
  %v1456 = vld [vmem:[%s17 + $0x20] sm:$0xff]
  %v1457 = vld [vmem:[%s17 + $0x28] sm:$0xff]
  %v1458 = vld [vmem:[%s17 + $0x30] sm:$0xff]
  %v1459 = vld [vmem:[%s17 + $0x38] sm:$0xff]
  %v1460 = vld [vmem:[%s17 + $0x40] sm:$0xff]
  %v1461 = vld [vmem:[%s17 + $0x48] sm:$0xff]
  %v1462 = vld [vmem:[%s17 + $0x50] sm:$0xff]
  %v1463 = vld [vmem:[%s17 + $0x58] sm:$0xff]
  %v1464 = vld [vmem:[%s17 + $0x60] sm:$0xff]
  %v1465 = vld [vmem:[%s17 + $0x68] sm:$0xff]
  %v1466 = vld [vmem:[%s17 + $0x70] sm:$0xff]
  %v1467 = vld [vmem:[%s17 + $0x78] sm:$0xff]
  %v1468 = vld [vmem:[%s18] sm:$0x1]
  %v1470 = vperm.slane %v1468, 0
  %1472 = vmatpush.msra.mxu0 %v1467
  %1473 = vmatpush.msra.mxu0 %v1466
  %1474 = vmatpush.msra.mxu0 %v1465
  %1475 = vmatpush.msra.mxu0 %v1464
  %1476 = vmatpush.msra.mxu0 %v1463
  %1477 = vmatpush.msra.mxu0 %v1462
  %1478 = vmatpush.msra.mxu0 %v1461
  %1479 = vmatpush.msra.mxu0 %v1460
  %1480 = vmatpush.msra.mxu0 %v1459
  %1481 = vmatpush.msra.mxu0 %v1458
  %1482 = vmatpush.msra.mxu0 %v1457
  %1483 = vmatpush.msra.mxu0 %v1456
  %1484 = vmatpush.msra.mxu0 %v1455
  %1485 = vmatpush.msra.mxu0 %v1454
  %1486 = vmatpush.msra.mxu0 %v1453
  %1487 = vmatpush.msra.mxu0 %v1452
  %1488 = vmatmul.f32.gmra.mxu0 %v1451
  %v1489 = vpop.f32.mrf.mxu0
  %v1490 = vadd.f32 %v1470, %v1489
  %1491 = vdwg.mxu0
  %vm1492 = vcmask 15360
  %1493 = vst.msk [vmem:[%s19] sm:$0xff] %vm1492, %v1490
  // Predicated region
  $region78: #{trigger_word_detector.1} parent=0 // pred_check
    _
  $region79: #{trigger_word_detector.1} parent=0 // pred_check_branch
    %1495 = sbr.rel (0) target = $region81
  $region80: #{trigger_word_detector.1} parent=0 // pred_region
    _
  $region81: #{trigger_word_detector.1} parent=0 // pred_fallthru
    _
  // Predicated region
  $region82: #{trigger_word_detector.1} parent=0 // pred_check
    _
  $region83: #{trigger_word_detector.1} parent=0 // pred_check_branch
    %1497 = sbr.rel (0) target = $region85
  $region84: #{trigger_word_detector.1} parent=0 // pred_region
    _
  $region85: #{trigger_word_detector.1} parent=0 // pred_fallthru
    _

</llo_original>
